<compile_context>
chip_gen: v5e
topology: v5e:2x2
jax: 0.10.0
libtpu: 0.0.40
codegen_flags: <defaults>
</compile_context>

<pallas_src>
import math
from functools import partial

import jax
import jax.numpy as jnp
from jax import lax
from jax.experimental import pallas as pl
from jax.experimental.pallas import tpu as pltpu


# ------------------------------- the kernel --------------------------------

def mha_kernel(x_ref, kv_ref, wq_ref, wkv_ref, wo_ref, bo_ref, o_ref,
               *, num_heads, is_causal):
    bt, Tq, Din = x_ref.shape
    _, Tkv, _ = kv_ref.shape
    D = wq_ref.shape[-1]                      # d_out
    hd = D // num_heads
    inv_sqrt_hd = 1.0 / math.sqrt(hd)

    # Row-packed activations; bf16 MXU operands, f32 accumulation.
    x_bf = x_ref[...].reshape(bt * Tq, Din).astype(jnp.bfloat16)
    kv_bf = kv_ref[...].reshape(bt * Tkv, Din).astype(jnp.bfloat16)

    # Lane-dense projections:
    #   q:   (rows_q, Din) @ (Din, D)    -> N = 128
    #   k|v: (rows_kv, Din) @ (Din, 2D)  -> N = 256, then 128-lane-aligned split
    q = jnp.dot(x_bf, wq_ref[...], preferred_element_type=jnp.float32)
    kvp = jnp.dot(kv_bf, wkv_ref[...], preferred_element_type=jnp.float32)

    q = q.reshape(bt, Tq, D).astype(jnp.bfloat16)
    k = kvp[:, :D].reshape(bt, Tkv, D).astype(jnp.bfloat16)
    v = kvp[:, D:].reshape(bt, Tkv, D).astype(jnp.bfloat16)

    if is_causal:
        row = lax.broadcasted_iota(jnp.int32, (Tq, Tkv), 0)
        col = lax.broadcasted_iota(jnp.int32, (Tq, Tkv), 1)
        causal_mask = (col > row)[None, :, :]            # (1, Tq, Tkv)

    # Per-head attention (static loop); heads are 32-lane static slices.
    ctx_heads = []
    for h in range(num_heads):
        sl = slice(h * hd, (h + 1) * hd)
        qh, kh, vh = q[:, :, sl], k[:, :, sl], v[:, :, sl]

        s = jnp.einsum("bqd,bkd->bqk", qh, kh,
                       preferred_element_type=jnp.float32) * inv_sqrt_hd
        if is_causal:
            # Mask fill kept on the f32 path (do not move to bf16).
            s = jnp.where(causal_mask, -1e30, s)

        m = jnp.max(s, axis=-1, keepdims=True)
        e = jnp.exp(s - m)
        p = e * pl.reciprocal(jnp.sum(e, axis=-1, keepdims=True), approx=True)

        ctx_heads.append(jnp.einsum("bqk,bkd->bqd", p.astype(jnp.bfloat16), vh,
                                    preferred_element_type=jnp.float32))

    # Lane-dense head packing, then a single K=128 output-projection matmul.
    ctx = jnp.concatenate(ctx_heads, axis=-1)            # (bt, Tq, D)
    ctx2d = ctx.reshape(bt * Tq, D).astype(jnp.bfloat16)
    out = jnp.dot(ctx2d, wo_ref[...],
                  preferred_element_type=jnp.float32) + bo_ref[...]
    o_ref[...] = out.reshape(bt, Tq, D).astype(o_ref.dtype)


# ------------------------------ host wrapper --------------------------------

def _prep_params(wq, wk, wv, wo, bo):
    """PyTorch-convention (d_out, d_in) weights -> lane-dense, matmul-ready bf16."""
    wq_t = wq.T.astype(jnp.bfloat16)                              # (Din, D)
    wkv_t = jnp.concatenate([wk.T, wv.T], axis=1).astype(jnp.bfloat16)  # (Din, 2D)
    wo_t = wo.T.astype(jnp.bfloat16)                              # (D, D)
    bo_r = bo.reshape(1, -1).astype(jnp.float32)                  # (1, D)
    return wq_t, wkv_t, wo_t, bo_r


def _num_tensorcores():
    """Best-effort TensorCore count; defaults to 1 (v5e/v6e behavior)."""
    try:
        info = pltpu.get_tpu_info()
    except Exception:
        return 1
    for attr in ("num_cores", "core_count", "num_tensorcores", "tensorcore_count"):
        val = getattr(info, attr, None)
        if isinstance(val, int) and val > 0:
            return val
    return 1


def _auto_b_tile(B, T, num_cores, target_rows=512):
    """Pick b_tile (rows per step = b_tile*T).

    Single-TC chips: biggest slab that fits target_rows (grid may be (1,)).
    Multi-TC chips: only split across cores if each step keeps >= 128 MXU rows.
    """
    divisors = [d for d in range(1, B + 1) if B % d == 0]
    cap = max(1, target_rows // max(T, 1))
    fitting = [d for d in divisors if d <= cap] or [1]
    b_tile = max(fitting)
    if num_cores >= 2:
        cand = [d for d in fitting if (B // d) >= num_cores and d * T >= 128]
        if cand:
            b_tile = max(cand)
    return b_tile


def multi_head_attention(x, wq, wk, wv, wo, bo, *, num_heads,
                         is_causal=False, key_value=None, b_tile=None):
    kv = x if key_value is None else key_value
    B, Tq, Din = x.shape
    Bk, Tkv, Dkv = kv.shape
    assert Bk == B and Dkv == Din
    d_out = wq.shape[0]
    hd = d_out // num_heads

    wq_t, wkv_t, wo_t, bo_r = _prep_params(wq, wk, wv, wo, bo)

    if b_tile is None:
        b_tile = _auto_b_tile(B, Tq, _num_tensorcores())
    assert B % b_tile == 0
    grid = (B // b_tile,)

    flops = (2 * B * Tq * Din * d_out                    # q projection
             + 2 * B * Tkv * Din * (2 * d_out)           # fused k,v projection
             + 2 * 2 * B * num_heads * Tq * Tkv * hd     # scores + attn@v
             + 2 * B * Tq * d_out * d_out)               # out projection
    transcendentals = B * num_heads * Tq * Tkv           # softmax exps
    bytes_accessed = (4 * x.size + 4 * kv.size
                      + 2 * (wq_t.size + wkv_t.size + wo_t.size)
                      + 4 * bo_r.size + 4 * B * Tq * d_out)

    kernel = partial(mha_kernel, num_heads=num_heads, is_causal=is_causal)

    return pl.pallas_call(
        kernel,
        out_shape=jax.ShapeDtypeStruct((B, Tq, d_out), x.dtype),
        grid_spec=pltpu.PrefetchScalarGridSpec(
            num_scalar_prefetch=0,
            grid=grid,
            in_specs=[
                pl.BlockSpec((b_tile, Tq, Din), lambda b: (b, 0, 0)),
                pl.BlockSpec((b_tile, Tkv, Din), lambda b: (b, 0, 0)),
                pl.BlockSpec(wq_t.shape, lambda b: (0, 0)),
                pl.BlockSpec(wkv_t.shape, lambda b: (0, 0)),
                pl.BlockSpec(wo_t.shape, lambda b: (0, 0)),
                pl.BlockSpec(bo_r.shape, lambda b: (0, 0)),
            ],
            out_specs=pl.BlockSpec((b_tile, Tq, d_out), lambda b: (b, 0, 0)),
        ),
        compiler_params=pltpu.CompilerParams(
            dimension_semantics=("parallel",)),
        cost_estimate=pl.CostEstimate(flops=flops,
                                      transcendentals=transcendentals,
                                      bytes_accessed=bytes_accessed),
    )(x, kv, wq_t, wkv_t, wo_t, bo_r)


# --------------------------- pure-JAX reference ------------------------------

def mha_ref(x, wq, wk, wv, wo, bo, *, num_heads, is_causal=False, key_value=None):
    kv = x if key_value is None else key_value
    B, Tq, _ = x.shape
    Tkv = kv.shape[1]
    d_out = wq.shape[0]
    hd = d_out // num_heads

    q = x @ wq.T
    k = kv @ wk.T
    v = kv @ wv.T
    q = q.reshape(B, Tq, num_heads, hd).transpose(0, 2, 1, 3)
    k = k.reshape(B, Tkv, num_heads, hd).transpose(0, 2, 1, 3)
    v = v.reshape(B, Tkv, num_heads, hd).transpose(0, 2, 1, 3)
    s = jnp.einsum("bhqd,bhkd->bhqk", q, k)
    if is_causal:
        mask = jnp.triu(jnp.ones((Tq, Tkv), bool), k=1)
        s = jnp.where(mask, -jnp.inf, s)
    p = jax.nn.softmax(s / math.sqrt(hd), axis=-1)
    ctx = jnp.einsum("bhqk,bhkd->bhqd", p, v).transpose(0, 2, 1, 3)
    ctx = ctx.reshape(B, Tq, d_out)
    return ctx @ wo.T + bo


# ----------------------------------- main ------------------------------------

if __name__ == "__main__":
    # batch, tokens, emb_dim (lane-dense), heads  -> head_dim = 32
    B, T, D, H = 4, 16, 128, 4
    T_KV = 24                                   # cross-attention memory length

    key = jax.random.PRNGKey(0)
    ks = jax.random.split(key, 8)
    scale = 0.05
    wq = scale * jax.random.normal(ks[0], (D, D), jnp.float32)   # nn.Linear.weight layout
    wk = scale * jax.random.normal(ks[1], (D, D), jnp.float32)
    wv = scale * jax.random.normal(ks[2], (D, D), jnp.float32)
    wo = scale * jax.random.normal(ks[3], (D, D), jnp.float32)
    bo = scale * jax.random.normal(ks[4], (D,), jnp.float32)

    x = jax.random.normal(ks[5], (B, T, D), jnp.float32)
    mem = jax.random.normal(ks[6], (B, T_KV, D), jnp.float32)

    # 1) encoder-style self-attention (key_value=None, is_causal=False)
    out = jax.block_until_ready(
        multi_head_attention(x, wq, wk, wv, wo, bo, num_heads=H))
    ref = mha_ref(x, wq, wk, wv, wo, bo, num_heads=H)
    assert out.shape == (B, T, D)
    assert jnp.allclose(out, ref, rtol=2e-2, atol=2e-2), "self-attn mismatch"

    # 2) causal (decoder) self-attention
    out_c = jax.block_until_ready(
        multi_head_attention(x, wq, wk, wv, wo, bo, num_heads=H, is_causal=True))
    ref_c = mha_ref(x, wq, wk, wv, wo, bo, num_heads=H, is_causal=True)
    assert jnp.allclose(out_c, ref_c, rtol=2e-2, atol=2e-2), "causal mismatch"

    # 3) cross-attention (key_value from encoder memory)
    out_x = jax.block_until_ready(
        multi_head_attention(x, wq, wk, wv, wo, bo, num_heads=H, key_value=mem))
    ref_x = mha_ref(x, wq, wk, wv, wo, bo, num_heads=H, key_value=mem)
    assert jnp.allclose(out_x, ref_x, rtol=2e-2, atol=2e-2), "cross-attn mismatch"

    print("KERNEL_OK")
</pallas_src>

<mosaic_0001>
module attributes {stable_mosaic.version = 11 : i64} {
  func.func @mha_kernel(%arg0: i32, %arg1: memref<4x16x128xf32, #tpu.memory_space<vmem>>, %arg2: memref<4x16x128xf32, #tpu.memory_space<vmem>>, %arg3: memref<128x128xbf16, #tpu.memory_space<vmem>>, %arg4: memref<128x256xbf16, #tpu.memory_space<vmem>>, %arg5: memref<128x128xbf16, #tpu.memory_space<vmem>>, %arg6: memref<1x128xf32, #tpu.memory_space<vmem>>, %arg7: memref<4x16x128xf32, #tpu.memory_space<vmem>>) attributes {dimension_semantics = [#tpu.dimension_semantics<parallel>], iteration_bounds = array<i64: 1>, scalar_prefetch = 0 : i64, scratch_operands = 0 : i64, tpu.core_type = #tpu.core_type<tc>, window_params = [{transform_indices = @transform_0, window_bounds = array<i64: 4, 16, 128>}, {transform_indices = @transform_1, window_bounds = array<i64: 4, 16, 128>}, {pipeline_mode = #tpu.pipeline_mode<synchronous>, transform_indices = @transform_2, window_bounds = array<i64: 128, 128>}, {pipeline_mode = #tpu.pipeline_mode<synchronous>, transform_indices = @transform_3, window_bounds = array<i64: 128, 256>}, {pipeline_mode = #tpu.pipeline_mode<synchronous>, transform_indices = @transform_4, window_bounds = array<i64: 128, 128>}, {pipeline_mode = #tpu.pipeline_mode<synchronous>, transform_indices = @transform_5, window_bounds = array<i64: 1, 128>}, {transform_indices = @transform_6, window_bounds = array<i64: 4, 16, 128>}]} {
    %c0 = arith.constant 0 : index
    %c0_0 = arith.constant 0 : index
    %c0_1 = arith.constant 0 : index
    %0 = vector.load %arg1[%c0, %c0_0, %c0_1] : memref<4x16x128xf32, #tpu.memory_space<vmem>>, vector<4x16x128xf32>
    %1 = vector.shape_cast %0 : vector<4x16x128xf32> to vector<64x128xf32>
    %2 = arith.truncf %1 : vector<64x128xf32> to vector<64x128xbf16>
    %c0_2 = arith.constant 0 : index
    %c0_3 = arith.constant 0 : index
    %c0_4 = arith.constant 0 : index
    %3 = vector.load %arg2[%c0_2, %c0_3, %c0_4] : memref<4x16x128xf32, #tpu.memory_space<vmem>>, vector<4x16x128xf32>
    %4 = vector.shape_cast %3 : vector<4x16x128xf32> to vector<64x128xf32>
    %5 = arith.truncf %4 : vector<64x128xf32> to vector<64x128xbf16>
    %c0_5 = arith.constant 0 : index
    %c0_6 = arith.constant 0 : index
    %6 = vector.load %arg3[%c0_5, %c0_6] : memref<128x128xbf16, #tpu.memory_space<vmem>>, vector<128x128xbf16>
    %cst = arith.constant dense<0.000000e+00> : vector<64x128xf32>
    %7 = tpu.matmul %2, %6, %cst {dimension_numbers = #tpu.dot_dimension_numbers<[1], [0], [0], [1], [0, 0, 1, 1], [], []>} : vector<64x128xbf16>, vector<128x128xbf16>, vector<64x128xf32> -> vector<64x128xf32>
    %c0_7 = arith.constant 0 : index
    %c0_8 = arith.constant 0 : index
    %8 = vector.load %arg4[%c0_7, %c0_8] : memref<128x256xbf16, #tpu.memory_space<vmem>>, vector<128x256xbf16>
    %cst_9 = arith.constant dense<0.000000e+00> : vector<64x256xf32>
    %9 = tpu.matmul %5, %8, %cst_9 {dimension_numbers = #tpu.dot_dimension_numbers<[1], [0], [0], [1], [0, 0, 1, 1], [], []>} : vector<64x128xbf16>, vector<128x256xbf16>, vector<64x256xf32> -> vector<64x256xf32>
    %10 = vector.shape_cast %7 : vector<64x128xf32> to vector<4x16x128xf32>
    %11 = arith.truncf %10 : vector<4x16x128xf32> to vector<4x16x128xbf16>
    %12 = vector.extract_strided_slice %9 {offsets = [0, 0], sizes = [64, 128], strides = [1, 1]} : vector<64x256xf32> to vector<64x128xf32>
    %13 = vector.shape_cast %12 : vector<64x128xf32> to vector<4x16x128xf32>
    %14 = arith.truncf %13 : vector<4x16x128xf32> to vector<4x16x128xbf16>
    %15 = vector.extract_strided_slice %9 {offsets = [0, 128], sizes = [64, 128], strides = [1, 1]} : vector<64x256xf32> to vector<64x128xf32>
    %16 = vector.shape_cast %15 : vector<64x128xf32> to vector<4x16x128xf32>
    %17 = arith.truncf %16 : vector<4x16x128xf32> to vector<4x16x128xbf16>
    %18 = vector.extract_strided_slice %11 {offsets = [0, 0, 0], sizes = [4, 16, 32], strides = [1, 1, 1]} : vector<4x16x128xbf16> to vector<4x16x32xbf16>
    %19 = vector.extract_strided_slice %14 {offsets = [0, 0, 0], sizes = [4, 16, 32], strides = [1, 1, 1]} : vector<4x16x128xbf16> to vector<4x16x32xbf16>
    %20 = vector.extract_strided_slice %17 {offsets = [0, 0, 0], sizes = [4, 16, 32], strides = [1, 1, 1]} : vector<4x16x128xbf16> to vector<4x16x32xbf16>
    "tpu.trace_start"() <{level = 10 : i32, message = "bqd,bkd->bqk"}> : () -> ()
    %cst_10 = arith.constant dense<0.000000e+00> : vector<4x16x16xf32>
    %21 = tpu.matmul %18, %19, %cst_10 {dimension_numbers = #tpu.dot_dimension_numbers<[2], [2], [1], [1], [0, 0, 0, 1, 1, 1], [0], [0]>} : vector<4x16x32xbf16>, vector<4x16x32xbf16>, vector<4x16x16xf32> -> vector<4x16x16xf32>
    "tpu.trace_stop"() : () -> ()
    %cst_11 = arith.constant 0.176776692 : f32
    %22 = vector.broadcast %cst_11 : f32 to vector<4x16x16xf32>
    %23 = arith.mulf %21, %22 : vector<4x16x16xf32>
    %cst_12 = arith.constant dense<0xFF800000> : vector<4x16xf32>
    %24 = vector.multi_reduction <maximumf>, %23, %cst_12 [2] : vector<4x16x16xf32> to vector<4x16xf32>
    %25 = vector.shape_cast %24 : vector<4x16xf32> to vector<4x16x1xf32>
    %26 = vector.broadcast %25 : vector<4x16x1xf32> to vector<4x16x16xf32>
    %27 = arith.subf %23, %26 : vector<4x16x16xf32>
    %28 = math.exp %27 : vector<4x16x16xf32>
    %cst_13 = arith.constant dense<0.000000e+00> : vector<4x16xf32>
    %29 = vector.multi_reduction <add>, %28, %cst_13 [2] : vector<4x16x16xf32> to vector<4x16xf32>
    %30 = vector.shape_cast %29 : vector<4x16xf32> to vector<4x16x1xf32>
    %31 = tpu.reciprocal %30 {approx = true} : vector<4x16x1xf32> -> vector<4x16x1xf32>
    %32 = vector.broadcast %31 : vector<4x16x1xf32> to vector<4x16x16xf32>
    %33 = arith.mulf %28, %32 : vector<4x16x16xf32>
    %34 = arith.truncf %33 : vector<4x16x16xf32> to vector<4x16x16xbf16>
    "tpu.trace_start"() <{level = 10 : i32, message = "bqk,bkd->bqd"}> : () -> ()
    %cst_14 = arith.constant dense<0.000000e+00> : vector<4x16x32xf32>
    %35 = tpu.matmul %34, %20, %cst_14 {dimension_numbers = #tpu.dot_dimension_numbers<[2], [1], [1], [2], [0, 0, 0, 1, 1, 2], [0], [0]>} : vector<4x16x16xbf16>, vector<4x16x32xbf16>, vector<4x16x32xf32> -> vector<4x16x32xf32>
    "tpu.trace_stop"() : () -> ()
    %36 = vector.extract_strided_slice %11 {offsets = [0, 0, 32], sizes = [4, 16, 32], strides = [1, 1, 1]} : vector<4x16x128xbf16> to vector<4x16x32xbf16>
    %37 = vector.extract_strided_slice %14 {offsets = [0, 0, 32], sizes = [4, 16, 32], strides = [1, 1, 1]} : vector<4x16x128xbf16> to vector<4x16x32xbf16>
    %38 = vector.extract_strided_slice %17 {offsets = [0, 0, 32], sizes = [4, 16, 32], strides = [1, 1, 1]} : vector<4x16x128xbf16> to vector<4x16x32xbf16>
    "tpu.trace_start"() <{level = 10 : i32, message = "bqd,bkd->bqk"}> : () -> ()
    %cst_15 = arith.constant dense<0.000000e+00> : vector<4x16x16xf32>
    %39 = tpu.matmul %36, %37, %cst_15 {dimension_numbers = #tpu.dot_dimension_numbers<[2], [2], [1], [1], [0, 0, 0, 1, 1, 1], [0], [0]>} : vector<4x16x32xbf16>, vector<4x16x32xbf16>, vector<4x16x16xf32> -> vector<4x16x16xf32>
    "tpu.trace_stop"() : () -> ()
    %cst_16 = arith.constant 0.176776692 : f32
    %40 = vector.broadcast %cst_16 : f32 to vector<4x16x16xf32>
    %41 = arith.mulf %39, %40 : vector<4x16x16xf32>
    %cst_17 = arith.constant dense<0xFF800000> : vector<4x16xf32>
    %42 = vector.multi_reduction <maximumf>, %41, %cst_17 [2] : vector<4x16x16xf32> to vector<4x16xf32>
    %43 = vector.shape_cast %42 : vector<4x16xf32> to vector<4x16x1xf32>
    %44 = vector.broadcast %43 : vector<4x16x1xf32> to vector<4x16x16xf32>
    %45 = arith.subf %41, %44 : vector<4x16x16xf32>
    %46 = math.exp %45 : vector<4x16x16xf32>
    %cst_18 = arith.constant dense<0.000000e+00> : vector<4x16xf32>
    %47 = vector.multi_reduction <add>, %46, %cst_18 [2] : vector<4x16x16xf32> to vector<4x16xf32>
    %48 = vector.shape_cast %47 : vector<4x16xf32> to vector<4x16x1xf32>
    %49 = tpu.reciprocal %48 {approx = true} : vector<4x16x1xf32> -> vector<4x16x1xf32>
    %50 = vector.broadcast %49 : vector<4x16x1xf32> to vector<4x16x16xf32>
    %51 = arith.mulf %46, %50 : vector<4x16x16xf32>
    %52 = arith.truncf %51 : vector<4x16x16xf32> to vector<4x16x16xbf16>
    "tpu.trace_start"() <{level = 10 : i32, message = "bqk,bkd->bqd"}> : () -> ()
    %cst_19 = arith.constant dense<0.000000e+00> : vector<4x16x32xf32>
    %53 = tpu.matmul %52, %38, %cst_19 {dimension_numbers = #tpu.dot_dimension_numbers<[2], [1], [1], [2], [0, 0, 0, 1, 1, 2], [0], [0]>} : vector<4x16x16xbf16>, vector<4x16x32xbf16>, vector<4x16x32xf32> -> vector<4x16x32xf32>
    "tpu.trace_stop"() : () -> ()
    %54 = vector.extract_strided_slice %11 {offsets = [0, 0, 64], sizes = [4, 16, 32], strides = [1, 1, 1]} : vector<4x16x128xbf16> to vector<4x16x32xbf16>
    %55 = vector.extract_strided_slice %14 {offsets = [0, 0, 64], sizes = [4, 16, 32], strides = [1, 1, 1]} : vector<4x16x128xbf16> to vector<4x16x32xbf16>
    %56 = vector.extract_strided_slice %17 {offsets = [0, 0, 64], sizes = [4, 16, 32], strides = [1, 1, 1]} : vector<4x16x128xbf16> to vector<4x16x32xbf16>
    "tpu.trace_start"() <{level = 10 : i32, message = "bqd,bkd->bqk"}> : () -> ()
    %cst_20 = arith.constant dense<0.000000e+00> : vector<4x16x16xf32>
    %57 = tpu.matmul %54, %55, %cst_20 {dimension_numbers = #tpu.dot_dimension_numbers<[2], [2], [1], [1], [0, 0, 0, 1, 1, 1], [0], [0]>} : vector<4x16x32xbf16>, vector<4x16x32xbf16>, vector<4x16x16xf32> -> vector<4x16x16xf32>
    "tpu.trace_stop"() : () -> ()
    %cst_21 = arith.constant 0.176776692 : f32
    %58 = vector.broadcast %cst_21 : f32 to vector<4x16x16xf32>
    %59 = arith.mulf %57, %58 : vector<4x16x16xf32>
    %cst_22 = arith.constant dense<0xFF800000> : vector<4x16xf32>
    %60 = vector.multi_reduction <maximumf>, %59, %cst_22 [2] : vector<4x16x16xf32> to vector<4x16xf32>
    %61 = vector.shape_cast %60 : vector<4x16xf32> to vector<4x16x1xf32>
    %62 = vector.broadcast %61 : vector<4x16x1xf32> to vector<4x16x16xf32>
    %63 = arith.subf %59, %62 : vector<4x16x16xf32>
    %64 = math.exp %63 : vector<4x16x16xf32>
    %cst_23 = arith.constant dense<0.000000e+00> : vector<4x16xf32>
    %65 = vector.multi_reduction <add>, %64, %cst_23 [2] : vector<4x16x16xf32> to vector<4x16xf32>
    %66 = vector.shape_cast %65 : vector<4x16xf32> to vector<4x16x1xf32>
    %67 = tpu.reciprocal %66 {approx = true} : vector<4x16x1xf32> -> vector<4x16x1xf32>
    %68 = vector.broadcast %67 : vector<4x16x1xf32> to vector<4x16x16xf32>
    %69 = arith.mulf %64, %68 : vector<4x16x16xf32>
    %70 = arith.truncf %69 : vector<4x16x16xf32> to vector<4x16x16xbf16>
    "tpu.trace_start"() <{level = 10 : i32, message = "bqk,bkd->bqd"}> : () -> ()
    %cst_24 = arith.constant dense<0.000000e+00> : vector<4x16x32xf32>
    %71 = tpu.matmul %70, %56, %cst_24 {dimension_numbers = #tpu.dot_dimension_numbers<[2], [1], [1], [2], [0, 0, 0, 1, 1, 2], [0], [0]>} : vector<4x16x16xbf16>, vector<4x16x32xbf16>, vector<4x16x32xf32> -> vector<4x16x32xf32>
    "tpu.trace_stop"() : () -> ()
    %72 = vector.extract_strided_slice %11 {offsets = [0, 0, 96], sizes = [4, 16, 32], strides = [1, 1, 1]} : vector<4x16x128xbf16> to vector<4x16x32xbf16>
    %73 = vector.extract_strided_slice %14 {offsets = [0, 0, 96], sizes = [4, 16, 32], strides = [1, 1, 1]} : vector<4x16x128xbf16> to vector<4x16x32xbf16>
    %74 = vector.extract_strided_slice %17 {offsets = [0, 0, 96], sizes = [4, 16, 32], strides = [1, 1, 1]} : vector<4x16x128xbf16> to vector<4x16x32xbf16>
    "tpu.trace_start"() <{level = 10 : i32, message = "bqd,bkd->bqk"}> : () -> ()
    %cst_25 = arith.constant dense<0.000000e+00> : vector<4x16x16xf32>
    %75 = tpu.matmul %72, %73, %cst_25 {dimension_numbers = #tpu.dot_dimension_numbers<[2], [2], [1], [1], [0, 0, 0, 1, 1, 1], [0], [0]>} : vector<4x16x32xbf16>, vector<4x16x32xbf16>, vector<4x16x16xf32> -> vector<4x16x16xf32>
    "tpu.trace_stop"() : () -> ()
    %cst_26 = arith.constant 0.176776692 : f32
    %76 = vector.broadcast %cst_26 : f32 to vector<4x16x16xf32>
    %77 = arith.mulf %75, %76 : vector<4x16x16xf32>
    %cst_27 = arith.constant dense<0xFF800000> : vector<4x16xf32>
    %78 = vector.multi_reduction <maximumf>, %77, %cst_27 [2] : vector<4x16x16xf32> to vector<4x16xf32>
    %79 = vector.shape_cast %78 : vector<4x16xf32> to vector<4x16x1xf32>
    %80 = vector.broadcast %79 : vector<4x16x1xf32> to vector<4x16x16xf32>
    %81 = arith.subf %77, %80 : vector<4x16x16xf32>
    %82 = math.exp %81 : vector<4x16x16xf32>
    %cst_28 = arith.constant dense<0.000000e+00> : vector<4x16xf32>
    %83 = vector.multi_reduction <add>, %82, %cst_28 [2] : vector<4x16x16xf32> to vector<4x16xf32>
    %84 = vector.shape_cast %83 : vector<4x16xf32> to vector<4x16x1xf32>
    %85 = tpu.reciprocal %84 {approx = true} : vector<4x16x1xf32> -> vector<4x16x1xf32>
    %86 = vector.broadcast %85 : vector<4x16x1xf32> to vector<4x16x16xf32>
    %87 = arith.mulf %82, %86 : vector<4x16x16xf32>
    %88 = arith.truncf %87 : vector<4x16x16xf32> to vector<4x16x16xbf16>
    "tpu.trace_start"() <{level = 10 : i32, message = "bqk,bkd->bqd"}> : () -> ()
    %cst_29 = arith.constant dense<0.000000e+00> : vector<4x16x32xf32>
    %89 = tpu.matmul %88, %74, %cst_29 {dimension_numbers = #tpu.dot_dimension_numbers<[2], [1], [1], [2], [0, 0, 0, 1, 1, 2], [0], [0]>} : vector<4x16x16xbf16>, vector<4x16x32xbf16>, vector<4x16x32xf32> -> vector<4x16x32xf32>
    "tpu.trace_stop"() : () -> ()
    %90 = tpu.concatenate %35, %53, %71, %89 in 2 : vector<4x16x32xf32>, vector<4x16x32xf32>, vector<4x16x32xf32>, vector<4x16x32xf32> -> vector<4x16x128xf32>
    %91 = vector.shape_cast %90 : vector<4x16x128xf32> to vector<64x128xf32>
    %92 = arith.truncf %91 : vector<64x128xf32> to vector<64x128xbf16>
    %c0_30 = arith.constant 0 : index
    %c0_31 = arith.constant 0 : index
    %93 = vector.load %arg5[%c0_30, %c0_31] : memref<128x128xbf16, #tpu.memory_space<vmem>>, vector<128x128xbf16>
    %cst_32 = arith.constant dense<0.000000e+00> : vector<64x128xf32>
    %94 = tpu.matmul %92, %93, %cst_32 {dimension_numbers = #tpu.dot_dimension_numbers<[1], [0], [0], [1], [0, 0, 1, 1], [], []>} : vector<64x128xbf16>, vector<128x128xbf16>, vector<64x128xf32> -> vector<64x128xf32>
    %c0_33 = arith.constant 0 : index
    %c0_34 = arith.constant 0 : index
    %95 = vector.load %arg6[%c0_33, %c0_34] : memref<1x128xf32, #tpu.memory_space<vmem>>, vector<1x128xf32>
    %96 = vector.broadcast %95 : vector<1x128xf32> to vector<64x128xf32>
    %97 = arith.addf %94, %96 : vector<64x128xf32>
    %98 = vector.shape_cast %97 : vector<64x128xf32> to vector<4x16x128xf32>
    %c0_35 = arith.constant 0 : index
    %c0_36 = arith.constant 0 : index
    %c0_37 = arith.constant 0 : index
    %99 = vector.load %arg7[%c0_35, %c0_36, %c0_37] : memref<4x16x128xf32, #tpu.memory_space<vmem>>, vector<4x16x128xf32>
    tpu.vector_store %arg7[%c0_35, %c0_36, %c0_37], %98 {strides = array<i32>} : memref<4x16x128xf32, #tpu.memory_space<vmem>>, vector<4x16x128xf32>,
    return
  }
  func.func @transform_0(%arg0: i32) -> (i32, i32, i32) {
    %c0_i32 = arith.constant 0 : i32
    %c0_i32_0 = arith.constant 0 : i32
    %c0_i32_1 = arith.constant 0 : i32
    return %arg0, %c0_i32, %c0_i32_0 : i32, i32, i32
  }
  func.func @transform_1(%arg0: i32) -> (i32, i32, i32) {
    %c0_i32 = arith.constant 0 : i32
    %c0_i32_0 = arith.constant 0 : i32
    %c0_i32_1 = arith.constant 0 : i32
    return %arg0, %c0_i32, %c0_i32_0 : i32, i32, i32
  }
  func.func @transform_2(%arg0: i32) -> (i32, i32) {
    %c0_i32 = arith.constant 0 : i32
    %c0_i32_0 = arith.constant 0 : i32
    %c0_i32_1 = arith.constant 0 : i32
    return %c0_i32, %c0_i32_0 : i32, i32
  }
  func.func @transform_3(%arg0: i32) -> (i32, i32) {
    %c0_i32 = arith.constant 0 : i32
    %c0_i32_0 = arith.constant 0 : i32
    %c0_i32_1 = arith.constant 0 : i32
    return %c0_i32, %c0_i32_0 : i32, i32
  }
  func.func @transform_4(%arg0: i32) -> (i32, i32) {
    %c0_i32 = arith.constant 0 : i32
    %c0_i32_0 = arith.constant 0 : i32
    %c0_i32_1 = arith.constant 0 : i32
    return %c0_i32, %c0_i32_0 : i32, i32
  }
  func.func @transform_5(%arg0: i32) -> (i32, i32) {
    %c0_i32 = arith.constant 0 : i32
    %c0_i32_0 = arith.constant 0 : i32
    %c0_i32_1 = arith.constant 0 : i32
    return %c0_i32, %c0_i32_0 : i32, i32
  }
  func.func @transform_6(%arg0: i32) -> (i32, i32, i32) {
    %c0_i32 = arith.constant 0 : i32
    %c0_i32_0 = arith.constant 0 : i32
    %c0_i32_1 = arith.constant 0 : i32
    return %arg0, %c0_i32, %c0_i32_0 : i32, i32, i32
  }
}

</mosaic_0001>

<llo_original>
// kernel: tpu_custom_call.1
$region0: #{tpu_custom_call.1}
  #allocation0 [shape = 'u32[]', space=smem, size = 0x4, offset = 0x4, fixed_abs, tag = 'smem constant byte address 0x4 - core index']
  #allocation1 [shape = 'u32[72,128]{1,0:T(1,128)}', space=vmem, size = 0x9000, scoped, tag = 'internal scratch']
  %s0 = inlined_call_operand.hbm [shape: f32[4,16,128], index: 0, kind: input, shape index: {}]
  %s1 = inlined_call_operand.hbm [shape: f32[4,16,128], index: 1, kind: input, shape index: {}]
  %s2 = inlined_call_operand.hbm [shape: bf16[128,128], index: 2, kind: input, shape index: {}]
  %s3 = inlined_call_operand.hbm [shape: bf16[128,256], index: 3, kind: input, shape index: {}]
  %s4 = inlined_call_operand.hbm [shape: bf16[128,128], index: 4, kind: input, shape index: {}]
  %s5 = inlined_call_operand.vmem [shape: f32[1,128], index: 5, kind: input, shape index: {}]
  %s6 = inlined_call_operand.hbm [shape: f32[4,16,128], index: 6, kind: output, shape index: {}]
  %s7 = sld [smem:[#allocation0]]
  $region54: #{tpu_custom_call.1} parent=0
    _
  %s9 = ssub.s32 1, %s7
  %s10 = scalar_select 0, %s9, %s7
  $region1: #{tpu_custom_call.1} parent=0
    #allocation2 [shape = 'u8[32768]{0}', space=vmem, size = 0x8000, scoped, tag = 'input window, operand 0, single buffered']
    #allocation3 [shape = 's32[1]{0}', space=sflag, size = 0x4, scoped, tag = 'scoped memory for tpu_custom_call.1']
    #allocation4 [shape = 's32[1]{0}', space=sflag, size = 0x4, scoped, tag = 'scoped memory for tpu_custom_call.1']
    #allocation5 [shape = 'u8[32768]{0}', space=vmem, size = 0x8000, scoped, tag = 'input window, operand 1, single buffered']
    #allocation6 [shape = 's32[1]{0}', space=sflag, size = 0x4, scoped, tag = 'scoped memory for tpu_custom_call.1']
    #allocation7 [shape = 'u8[32768]{0}', space=vmem, size = 0x8000, scoped, tag = 'input window, operand 2, single buffered']
    #allocation8 [shape = 'u8[65536]{0}', space=vmem, size = 0x10000, scoped, tag = 'input window, operand 3, single buffered']
    #allocation9 [shape = 's32[1]{0}', space=sflag, size = 0x4, scoped, tag = 'scoped memory for tpu_custom_call.1']
    #allocation10 [shape = 'u8[32768]{0}', space=vmem, size = 0x8000, scoped, tag = 'input window, operand 4, single buffered']
    #allocation11 [shape = 'u8[32768]{0}', space=vmem, size = 0x8000, scoped, tag = 'output window, operand 0, single buffered']
    %11 = vsyncpa [#allocation3], 0
    %12 = vsyncpa [#allocation6], 0
    %13 = vsyncpa [#allocation9], 0
    %14 = vsyncpa [#allocation4], 0
    // Predicated region
    $region2: #{tpu_custom_call.1} parent=1 // pred_check
      _
    $region3: #{tpu_custom_call.1} parent=1 // pred_check_branch
      %16 = sbr.rel (0) target = $region5
    $region4: #{tpu_custom_call.1} parent=1 // pred_region
      %18 = vsyncadd [#allocation3], 0
      %s19 = sshll.u32 %s0, 4
      %s20 = int_to_ptr.hbm [resolvable:$true] %s19
      %s21 = sshll.u32 [#allocation2], 4
      %s22 = int_to_ptr.vmem [resolvable:$true] %s21
      %27 = dma.hbm_to_vmem [thread:$0]  %s20, 1024, %s22, [#allocation3], 128, 128, 8
    $region5: #{tpu_custom_call.1} parent=1 // pred_fallthru
      _
    // Predicated region
    $region6: #{tpu_custom_call.1} parent=1 // pred_check
      _
    $region7: #{tpu_custom_call.1} parent=1 // pred_check_branch
      %29 = sbr.rel (0) target = $region9
    $region8: #{tpu_custom_call.1} parent=1 // pred_region
      %31 = vsyncadd [#allocation6], 0
      %s32 = sshll.u32 %s1, 4
      %s33 = int_to_ptr.hbm [resolvable:$true] %s32
      %s34 = sshll.u32 [#allocation5], 4
      %s35 = int_to_ptr.vmem [resolvable:$true] %s34
      %40 = dma.hbm_to_vmem [thread:$0]  %s33, 1024, %s35, [#allocation6], 128, 128, 8
    $region9: #{tpu_custom_call.1} parent=1 // pred_fallthru
      _
    // Predicated region
    $region10: #{tpu_custom_call.1} parent=1 // pred_check
      _
    $region11: #{tpu_custom_call.1} parent=1 // pred_check_branch
      %42 = sbr.rel (0) target = $region13
    $region12: #{tpu_custom_call.1} parent=1 // pred_region
      %44 = vsyncadd [#allocation6], 0
      %s45 = sshll.u32 %s2, 4
      %s46 = int_to_ptr.hbm [resolvable:$true] %s45
      %s47 = sshll.u32 [#allocation7], 4
      %s48 = int_to_ptr.vmem [resolvable:$true] %s47
      %53 = dma.hbm_to_vmem [thread:$0]  %s46, 1024, %s48, [#allocation6], 64, 64, 4
    $region13: #{tpu_custom_call.1} parent=1 // pred_fallthru
      _
    // Predicated region
    $region14: #{tpu_custom_call.1} parent=1 // pred_check
      _
    $region15: #{tpu_custom_call.1} parent=1 // pred_check_branch
      %55 = sbr.rel (0) target = $region17
    $region16: #{tpu_custom_call.1} parent=1 // pred_region
      %57 = vsyncadd [#allocation9], 0
      %s58 = sshll.u32 %s3, 4
      %s59 = int_to_ptr.hbm [resolvable:$true] %s58
      %s60 = sshll.u32 [#allocation8], 4
      %s61 = int_to_ptr.vmem [resolvable:$true] %s60
      %66 = dma.hbm_to_vmem [thread:$0]  %s59, 2048, %s61, [#allocation9], 128, 128, 8
    $region17: #{tpu_custom_call.1} parent=1 // pred_fallthru
      _
    // Predicated region
    $region18: #{tpu_custom_call.1} parent=1 // pred_check
      _
    $region19: #{tpu_custom_call.1} parent=1 // pred_check_branch
      %68 = sbr.rel (0) target = $region21
    $region20: #{tpu_custom_call.1} parent=1 // pred_region
      %70 = vsyncadd [#allocation9], 0
      %s71 = sshll.u32 %s4, 4
      %s72 = int_to_ptr.hbm [resolvable:$true] %s71
      %s73 = sshll.u32 [#allocation10], 4
      %s74 = int_to_ptr.vmem [resolvable:$true] %s73
      %79 = dma.hbm_to_vmem [thread:$0]  %s72, 1024, %s74, [#allocation9], 64, 64, 4
    $region21: #{tpu_custom_call.1} parent=1 // pred_fallthru
      _
    // Predicated region
    $region22: #{tpu_custom_call.1} parent=1 // pred_check
      _
    $region23: #{tpu_custom_call.1} parent=1 // pred_check_branch
      %81 = sbr.rel (0) target = $region25
    $region24: #{tpu_custom_call.1} parent=1 // pred_region
      _
    $region25: #{tpu_custom_call.1} parent=1 // pred_fallthru
      _
    // Predicated region
    $region26: #{tpu_custom_call.1} parent=1 // pred_check
      _
    $region27: #{tpu_custom_call.1} parent=1 // pred_check_branch
      %83 = sbr.rel (0) target = $region29
    $region28: #{tpu_custom_call.1} parent=1 // pred_region
      %85 = dma.done [#allocation3], 1024
    $region29: #{tpu_custom_call.1} parent=1 // pred_fallthru
      _
    // Predicated region
    $region30: #{tpu_custom_call.1} parent=1 // pred_check
      _
    $region31: #{tpu_custom_call.1} parent=1 // pred_check_branch
      %87 = sbr.rel (0) target = $region33
    $region32: #{tpu_custom_call.1} parent=1 // pred_region
      %89 = dma.done [#allocation6], 1024
    $region33: #{tpu_custom_call.1} parent=1 // pred_fallthru
      _
    // Predicated region
    $region34: #{tpu_custom_call.1} parent=1 // pred_check
      _
    $region35: #{tpu_custom_call.1} parent=1 // pred_check_branch
      %91 = sbr.rel (0) target = $region37
    $region36: #{tpu_custom_call.1} parent=1 // pred_region
      %93 = dma.done [#allocation6], 1024
    $region37: #{tpu_custom_call.1} parent=1 // pred_fallthru
      _
    // Predicated region
    $region38: #{tpu_custom_call.1} parent=1 // pred_check
      _
    $region39: #{tpu_custom_call.1} parent=1 // pred_check_branch
      %95 = sbr.rel (0) target = $region41
    $region40: #{tpu_custom_call.1} parent=1 // pred_region
      %97 = dma.done [#allocation9], 2048
    $region41: #{tpu_custom_call.1} parent=1 // pred_fallthru
      _
    // Predicated region
    $region42: #{tpu_custom_call.1} parent=1 // pred_check
      _
    $region43: #{tpu_custom_call.1} parent=1 // pred_check_branch
      %99 = sbr.rel (0) target = $region45
    $region44: #{tpu_custom_call.1} parent=1 // pred_region
      %101 = dma.done [#allocation9], 1024
    $region45: #{tpu_custom_call.1} parent=1 // pred_fallthru
      _
    %v103 = vld [vmem:[#allocation2] sm:$0xff]
    %v104 = vld [vmem:[#allocation2 + $0x8] sm:$0xff]
    %v105 = vld [vmem:[#allocation2 + $0x10] sm:$0xff]
    %v106 = vld [vmem:[#allocation2 + $0x18] sm:$0xff]
    %v107 = vld [vmem:[#allocation2 + $0x20] sm:$0xff]
    %v108 = vld [vmem:[#allocation2 + $0x28] sm:$0xff]
    %v109 = vld [vmem:[#allocation2 + $0x30] sm:$0xff]
    %v110 = vld [vmem:[#allocation2 + $0x38] sm:$0xff]
    %v111 = vpack.c.bf16 %v104, %v103
    %v112 = vpack.c.bf16 %v106, %v105
    %v113 = vpack.c.bf16 %v108, %v107
    %v114 = vpack.c.bf16 %v110, %v109
    %v115 = vld [vmem:[#allocation5] sm:$0xff]
    %v116 = vld [vmem:[#allocation5 + $0x8] sm:$0xff]
    %v117 = vld [vmem:[#allocation5 + $0x10] sm:$0xff]
    %v118 = vld [vmem:[#allocation5 + $0x18] sm:$0xff]
    %v119 = vld [vmem:[#allocation5 + $0x20] sm:$0xff]
    %v120 = vld [vmem:[#allocation5 + $0x28] sm:$0xff]
    %v121 = vld [vmem:[#allocation5 + $0x30] sm:$0xff]
    %v122 = vld [vmem:[#allocation5 + $0x38] sm:$0xff]
    %v123 = vpack.c.bf16 %v116, %v115
    %v124 = vpack.c.bf16 %v118, %v117
    %v125 = vpack.c.bf16 %v120, %v119
    %v126 = vpack.c.bf16 %v122, %v121
    %v127 = vld [vmem:[#allocation7] sm:$0xf]
    %v128 = vld [vmem:[#allocation7 + $0x4] sm:$0xf]
    %v129 = vld [vmem:[#allocation7 + $0x8] sm:$0xf]
    %v130 = vld [vmem:[#allocation7 + $0xc] sm:$0xf]
    %v131 = vld [vmem:[#allocation7 + $0x10] sm:$0xf]
    %v132 = vld [vmem:[#allocation7 + $0x14] sm:$0xf]
    %v133 = vld [vmem:[#allocation7 + $0x18] sm:$0xf]
    %v134 = vld [vmem:[#allocation7 + $0x1c] sm:$0xf]
    %v135 = vld [vmem:[#allocation7 + $0x20] sm:$0xf]
    %v136 = vld [vmem:[#allocation7 + $0x24] sm:$0xf]
    %v137 = vld [vmem:[#allocation7 + $0x28] sm:$0xf]
    %v138 = vld [vmem:[#allocation7 + $0x2c] sm:$0xf]
    %v139 = vld [vmem:[#allocation7 + $0x30] sm:$0xf]
    %v140 = vld [vmem:[#allocation7 + $0x34] sm:$0xf]
    %v141 = vld [vmem:[#allocation7 + $0x38] sm:$0xf]
    %v142 = vld [vmem:[#allocation7 + $0x3c] sm:$0xf]
    %v159 = vunpack.c.l.b16 %v127
    %v160 = vunpack.c.l.b16 %v128
    %v161 = vunpack.c.l.b16 %v129
    %v162 = vunpack.c.l.b16 %v130
    %v163 = vunpack.c.l.b16 %v131
    %v164 = vunpack.c.l.b16 %v132
    %v165 = vunpack.c.l.b16 %v133
    %v166 = vunpack.c.l.b16 %v134
    %v167 = vunpack.c.l.b16 %v135
    %v168 = vunpack.c.l.b16 %v136
    %v169 = vunpack.c.l.b16 %v137
    %v170 = vunpack.c.l.b16 %v138
    %v171 = vunpack.c.l.b16 %v139
    %v172 = vunpack.c.l.b16 %v140
    %v173 = vunpack.c.l.b16 %v141
    %v174 = vunpack.c.l.b16 %v142
    %v175 = vpack.c.b16 %v160, %v159
    %v176 = vpack.c.b16 %v162, %v161
    %v177 = vpack.c.b16 %v164, %v163
    %v178 = vpack.c.b16 %v166, %v165
    %v179 = vpack.c.b16 %v168, %v167
    %v180 = vpack.c.b16 %v170, %v169
    %v181 = vpack.c.b16 %v172, %v171
    %v182 = vpack.c.b16 %v174, %v173
    %191 = vmatpush.bf16.msra.mxu0 %v182
    %192 = vmatpush.bf16.msra.mxu0 %v181
    %193 = vmatpush.bf16.msra.mxu0 %v180
    %194 = vmatpush.bf16.msra.mxu0 %v179
    %195 = vmatpush.bf16.msra.mxu0 %v178
    %196 = vmatpush.bf16.msra.mxu0 %v177
    %197 = vmatpush.bf16.msra.mxu0 %v176
    %198 = vmatpush.bf16.msra.mxu0 %v175
    %199 = vmatmul.bf16.gmra.mxu0 %v111
    %v200 = vpop.f32.mrf.mxu0
    %v201 = vadd.f32 0.0, %v200
    %v202 = vpop.f32.mrf.mxu0
    %v203 = vadd.f32 0.0, %v202
    %204 = vmatmul.bf16.gmra.mxu0 %v112
    %v205 = vpop.f32.mrf.mxu0
    %v206 = vadd.f32 0.0, %v205
    %v207 = vpop.f32.mrf.mxu0
    %v208 = vadd.f32 0.0, %v207
    %209 = vmatmul.bf16.gmra.mxu0 %v113
    %v210 = vpop.f32.mrf.mxu0
    %v211 = vadd.f32 0.0, %v210
    %v212 = vpop.f32.mrf.mxu0
    %v213 = vadd.f32 0.0, %v212
    %214 = vmatmul.bf16.gmra.mxu0 %v114
    %v215 = vpop.f32.mrf.mxu0
    %v216 = vadd.f32 0.0, %v215
    %v217 = vpop.f32.mrf.mxu0
    %v218 = vadd.f32 0.0, %v217
    %219 = vdwg.mxu0
    %v220 = vld [vmem:[#allocation8] sm:$0xff]
    %v221 = vld [vmem:[#allocation8 + $0x8] sm:$0xff]
    %v222 = vld [vmem:[#allocation8 + $0x10] sm:$0xff]
    %v223 = vld [vmem:[#allocation8 + $0x18] sm:$0xff]
    %v224 = vld [vmem:[#allocation8 + $0x20] sm:$0xff]
    %v225 = vld [vmem:[#allocation8 + $0x28] sm:$0xff]
    %v226 = vld [vmem:[#allocation8 + $0x30] sm:$0xff]
    %v227 = vld [vmem:[#allocation8 + $0x38] sm:$0xff]
    %v228 = vld [vmem:[#allocation8 + $0x40] sm:$0xff]
    %v229 = vld [vmem:[#allocation8 + $0x48] sm:$0xff]
    %v230 = vld [vmem:[#allocation8 + $0x50] sm:$0xff]
    %v231 = vld [vmem:[#allocation8 + $0x58] sm:$0xff]
    %v232 = vld [vmem:[#allocation8 + $0x60] sm:$0xff]
    %v233 = vld [vmem:[#allocation8 + $0x68] sm:$0xff]
    %v234 = vld [vmem:[#allocation8 + $0x70] sm:$0xff]
    %v235 = vld [vmem:[#allocation8 + $0x78] sm:$0xff]
    %v252 = vunpack.c.l.b16 %v220
    %v253 = vunpack.c.h.b16 %v220
    %v254 = vunpack.c.l.b16 %v221
    %v255 = vunpack.c.h.b16 %v221
    %v256 = vunpack.c.l.b16 %v222
    %v257 = vunpack.c.h.b16 %v222
    %v258 = vunpack.c.l.b16 %v223
    %v259 = vunpack.c.h.b16 %v223
    %v260 = vunpack.c.l.b16 %v224
    %v261 = vunpack.c.h.b16 %v224
    %v262 = vunpack.c.l.b16 %v225
    %v263 = vunpack.c.h.b16 %v225
    %v264 = vunpack.c.l.b16 %v226
    %v265 = vunpack.c.h.b16 %v226
    %v266 = vunpack.c.l.b16 %v227
    %v267 = vunpack.c.h.b16 %v227
    %v268 = vunpack.c.l.b16 %v228
    %v269 = vunpack.c.h.b16 %v228
    %v270 = vunpack.c.l.b16 %v229
    %v271 = vunpack.c.h.b16 %v229
    %v272 = vunpack.c.l.b16 %v230
    %v273 = vunpack.c.h.b16 %v230
    %v274 = vunpack.c.l.b16 %v231
    %v275 = vunpack.c.h.b16 %v231
    %v276 = vunpack.c.l.b16 %v232
    %v277 = vunpack.c.h.b16 %v232
    %v278 = vunpack.c.l.b16 %v233
    %v279 = vunpack.c.h.b16 %v233
    %v280 = vunpack.c.l.b16 %v234
    %v281 = vunpack.c.h.b16 %v234
    %v282 = vunpack.c.l.b16 %v235
    %v283 = vunpack.c.h.b16 %v235
    %v284 = vpack.c.b16 %v254, %v252
    %v285 = vpack.c.b16 %v255, %v253
    %v286 = vpack.c.b16 %v258, %v256
    %v287 = vpack.c.b16 %v259, %v257
    %v288 = vpack.c.b16 %v262, %v260
    %v289 = vpack.c.b16 %v263, %v261
    %v290 = vpack.c.b16 %v266, %v264
    %v291 = vpack.c.b16 %v267, %v265
    %v292 = vpack.c.b16 %v270, %v268
    %v293 = vpack.c.b16 %v271, %v269
    %v294 = vpack.c.b16 %v274, %v272
    %v295 = vpack.c.b16 %v275, %v273
    %v296 = vpack.c.b16 %v278, %v276
    %v297 = vpack.c.b16 %v279, %v277
    %v298 = vpack.c.b16 %v282, %v280
    %v299 = vpack.c.b16 %v283, %v281
    %316 = vmatpush.bf16.msra.mxu0 %v298
    %317 = vmatpush.bf16.msra.mxu0 %v296
    %318 = vmatpush.bf16.msra.mxu0 %v294
    %319 = vmatpush.bf16.msra.mxu0 %v292
    %320 = vmatpush.bf16.msra.mxu0 %v290
    %321 = vmatpush.bf16.msra.mxu0 %v288
    %322 = vmatpush.bf16.msra.mxu0 %v286
    %323 = vmatpush.bf16.msra.mxu0 %v284
    %324 = vmatmul.bf16.gmra.mxu0 %v123
    %v325 = vpop.f32.mrf.mxu0
    %v326 = vadd.f32 0.0, %v325
    %v327 = vpop.f32.mrf.mxu0
    %v328 = vadd.f32 0.0, %v327
    %329 = vmatmul.bf16.gmra.mxu0 %v124
    %v330 = vpop.f32.mrf.mxu0
    %v331 = vadd.f32 0.0, %v330
    %v332 = vpop.f32.mrf.mxu0
    %v333 = vadd.f32 0.0, %v332
    %334 = vmatmul.bf16.gmra.mxu0 %v125
    %v335 = vpop.f32.mrf.mxu0
    %v336 = vadd.f32 0.0, %v335
    %v337 = vpop.f32.mrf.mxu0
    %v338 = vadd.f32 0.0, %v337
    %339 = vmatmul.bf16.gmra.mxu0 %v126
    %v340 = vpop.f32.mrf.mxu0
    %v341 = vadd.f32 0.0, %v340
    %v342 = vpop.f32.mrf.mxu0
    %v343 = vadd.f32 0.0, %v342
    %344 = vdwg.mxu0
    %345 = vmatpush.bf16.msra.mxu0 %v299
    %346 = vmatpush.bf16.msra.mxu0 %v297
    %347 = vmatpush.bf16.msra.mxu0 %v295
    %348 = vmatpush.bf16.msra.mxu0 %v293
    %349 = vmatpush.bf16.msra.mxu0 %v291
    %350 = vmatpush.bf16.msra.mxu0 %v289
    %351 = vmatpush.bf16.msra.mxu0 %v287
    %352 = vmatpush.bf16.msra.mxu0 %v285
    %353 = vmatmul.bf16.gmra.mxu0 %v123
    %v354 = vpop.f32.mrf.mxu0
    %v355 = vadd.f32 0.0, %v354
    %v356 = vpop.f32.mrf.mxu0
    %v357 = vadd.f32 0.0, %v356
    %358 = vmatmul.bf16.gmra.mxu0 %v124
    %v359 = vpop.f32.mrf.mxu0
    %v360 = vadd.f32 0.0, %v359
    %v361 = vpop.f32.mrf.mxu0
    %v362 = vadd.f32 0.0, %v361
    %363 = vmatmul.bf16.gmra.mxu0 %v125
    %v364 = vpop.f32.mrf.mxu0
    %v365 = vadd.f32 0.0, %v364
    %v366 = vpop.f32.mrf.mxu0
    %v367 = vadd.f32 0.0, %v366
    %368 = vmatmul.bf16.gmra.mxu0 %v126
    %v369 = vpop.f32.mrf.mxu0
    %v370 = vadd.f32 0.0, %v369
    %v371 = vpop.f32.mrf.mxu0
    %v372 = vadd.f32 0.0, %v371
    %373 = vdwg.mxu0
    %v374 = vpack.c.bf16 %v201, %v201
    %v375 = vpack.c.bf16 %v203, %v203
    %v376 = vpack.c.bf16 %v206, %v206
    %v377 = vpack.c.bf16 %v208, %v208
    %v378 = vpack.c.bf16 %v211, %v211
    %v379 = vpack.c.bf16 %v213, %v213
    %v380 = vpack.c.bf16 %v216, %v216
    %v381 = vpack.c.bf16 %v218, %v218
    %v382 = vpack.c.bf16 %v326, %v326
    %v383 = vpack.c.bf16 %v328, %v328
    %v384 = vpack.c.bf16 %v331, %v331
    %v385 = vpack.c.bf16 %v333, %v333
    %v386 = vpack.c.bf16 %v336, %v336
    %v387 = vpack.c.bf16 %v338, %v338
    %v388 = vpack.c.bf16 %v341, %v341
    %v389 = vpack.c.bf16 %v343, %v343
    %v390 = vpack.c.bf16 %v355, %v355
    %v391 = vpack.c.bf16 %v357, %v357
    %v392 = vpack.c.bf16 %v360, %v360
    %v393 = vpack.c.bf16 %v362, %v362
    %v394 = vpack.c.bf16 %v365, %v365
    %v395 = vpack.c.bf16 %v367, %v367
    %v396 = vpack.c.bf16 %v370, %v370
    %v397 = vpack.c.bf16 %v372, %v372
    %v400 = vunpack.c.l.b16 %v374
    %v401 = vunpack.c.l.b16 %v375
    %v402 = vpack.c.b16 %v401, %v400
    %v405 = vunpack.c.l.b16 %v382
    %v406 = vunpack.c.l.b16 %v383
    %v407 = vpack.c.b16 %v406, %v405
    %vm408 = vcmask 261120
    %v410 = vsel %vm408, %v402, 0
    %v413 = vsel %vm408, %v407, 0
    %415 = vmatpush.bf16.xpose.msra.mxu0 0
    %416 = vmatpush.bf16.xpose.msra.mxu0 0
    %417 = vmatpush.bf16.xpose.msra.mxu0 0
    %418 = vmatpush.bf16.xpose.msra.mxu0 0
    %419 = vmatpush.bf16.xpose.msra.mxu0 0
    %420 = vmatpush.bf16.xpose.msra.mxu0 0
    %421 = vmatpush.bf16.xpose.msra.mxu0 0
    %422 = vmatpush.bf16.xpose.msra.mxu0 %v413
    %423 = vmatmul.bf16.gmra.mxu0 %v410
    %v424 = vpop.f32.mrf.mxu0
    %v425 = vadd.f32 0.0, %v424
    %v426 = vpop.f32.mrf.mxu0
    %v427 = vadd.f32 0.0, %v426
    %428 = vdwg.mxu0
    %v431 = vunpack.c.l.b16 %v376
    %v432 = vunpack.c.l.b16 %v377
    %v433 = vpack.c.b16 %v432, %v431
    %v436 = vunpack.c.l.b16 %v384
    %v437 = vunpack.c.l.b16 %v385
    %v438 = vpack.c.b16 %v437, %v436
    %v440 = vsel %vm408, %v433, 0
    %v443 = vsel %vm408, %v438, 0
    %445 = vmatpush.bf16.xpose.msra.mxu0 0
    %446 = vmatpush.bf16.xpose.msra.mxu0 0
    %447 = vmatpush.bf16.xpose.msra.mxu0 0
    %448 = vmatpush.bf16.xpose.msra.mxu0 0
    %449 = vmatpush.bf16.xpose.msra.mxu0 0
    %450 = vmatpush.bf16.xpose.msra.mxu0 0
    %451 = vmatpush.bf16.xpose.msra.mxu0 0
    %452 = vmatpush.bf16.xpose.msra.mxu0 %v443
    %453 = vmatmul.bf16.gmra.mxu0 %v440
    %v454 = vpop.f32.mrf.mxu0
    %v455 = vadd.f32 0.0, %v454
    %v456 = vpop.f32.mrf.mxu0
    %v457 = vadd.f32 0.0, %v456
    %458 = vdwg.mxu0
    %v461 = vunpack.c.l.b16 %v378
    %v462 = vunpack.c.l.b16 %v379
    %v463 = vpack.c.b16 %v462, %v461
    %v466 = vunpack.c.l.b16 %v386
    %v467 = vunpack.c.l.b16 %v387
    %v468 = vpack.c.b16 %v467, %v466
    %v470 = vsel %vm408, %v463, 0
    %v473 = vsel %vm408, %v468, 0
    %475 = vmatpush.bf16.xpose.msra.mxu0 0
    %476 = vmatpush.bf16.xpose.msra.mxu0 0
    %477 = vmatpush.bf16.xpose.msra.mxu0 0
    %478 = vmatpush.bf16.xpose.msra.mxu0 0
    %479 = vmatpush.bf16.xpose.msra.mxu0 0
    %480 = vmatpush.bf16.xpose.msra.mxu0 0
    %481 = vmatpush.bf16.xpose.msra.mxu0 0
    %482 = vmatpush.bf16.xpose.msra.mxu0 %v473
    %483 = vmatmul.bf16.gmra.mxu0 %v470
    %v484 = vpop.f32.mrf.mxu0
    %v485 = vadd.f32 0.0, %v484
    %v486 = vpop.f32.mrf.mxu0
    %v487 = vadd.f32 0.0, %v486
    %488 = vdwg.mxu0
    %v491 = vunpack.c.l.b16 %v380
    %v492 = vunpack.c.l.b16 %v381
    %v493 = vpack.c.b16 %v492, %v491
    %v496 = vunpack.c.l.b16 %v388
    %v497 = vunpack.c.l.b16 %v389
    %v498 = vpack.c.b16 %v497, %v496
    %v500 = vsel %vm408, %v493, 0
    %v503 = vsel %vm408, %v498, 0
    %505 = vmatpush.bf16.xpose.msra.mxu0 0
    %506 = vmatpush.bf16.xpose.msra.mxu0 0
    %507 = vmatpush.bf16.xpose.msra.mxu0 0
    %508 = vmatpush.bf16.xpose.msra.mxu0 0
    %509 = vmatpush.bf16.xpose.msra.mxu0 0
    %510 = vmatpush.bf16.xpose.msra.mxu0 0
    %511 = vmatpush.bf16.xpose.msra.mxu0 0
    %512 = vmatpush.bf16.xpose.msra.mxu0 %v503
    %513 = vmatmul.bf16.gmra.mxu0 %v500
    %v514 = vpop.f32.mrf.mxu0
    %v515 = vadd.f32 0.0, %v514
    %v516 = vpop.f32.mrf.mxu0
    %v517 = vadd.f32 0.0, %v516
    %518 = vdwg.mxu0
    %v519 = vmul.f32 %v425, 0.17677669
    %v520 = vmul.f32 %v427, 0.17677669
    %v521 = vmul.f32 %v455, 0.17677669
    %v522 = vmul.f32 %v457, 0.17677669
    %v523 = vmul.f32 %v485, 0.17677669
    %v524 = vmul.f32 %v487, 0.17677669
    %v525 = vmul.f32 %v515, 0.17677669
    %v526 = vmul.f32 %v517, 0.17677669
    %vm527 = vcmask 130048
    %v528 = vsel %vm527, %v519, -inf
    %529 = vmax.xlane.f32.xlu0 %v528
    %v530 = vpop.xlane.xlu0 %529
    %v531 = vsel %vm527, %v520, -inf
    %532 = vmax.xlane.f32.xlu0 %v531
    %v533 = vpop.xlane.xlu0 %532
    %v534 = vsel %vm527, %v521, -inf
    %535 = vmax.xlane.f32.xlu0 %v534
    %v536 = vpop.xlane.xlu0 %535
    %v537 = vsel %vm527, %v522, -inf
    %538 = vmax.xlane.f32.xlu0 %v537
    %v539 = vpop.xlane.xlu0 %538
    %v540 = vsel %vm527, %v523, -inf
    %541 = vmax.xlane.f32.xlu0 %v540
    %v542 = vpop.xlane.xlu0 %541
    %v543 = vsel %vm527, %v524, -inf
    %544 = vmax.xlane.f32.xlu0 %v543
    %v545 = vpop.xlane.xlu0 %544
    %v546 = vsel %vm527, %v525, -inf
    %547 = vmax.xlane.f32.xlu0 %v546
    %v548 = vpop.xlane.xlu0 %547
    %v549 = vsel %vm527, %v526, -inf
    %550 = vmax.xlane.f32.xlu0 %v549
    %v551 = vpop.xlane.xlu0 %550
    %v552 = vsub.f32 %v519, %v530
    %v553 = vsub.f32 %v520, %v533
    %v554 = vsub.f32 %v521, %v536
    %v555 = vsub.f32 %v522, %v539
    %v556 = vsub.f32 %v523, %v542
    %v557 = vsub.f32 %v524, %v545
    %v558 = vsub.f32 %v525, %v548
    %v559 = vsub.f32 %v526, %v551
    %v560 = vmul.f32 %v552, 1.442695
    %v561 = vpow.pop %v560
    %v562 = vmul.f32 %v553, 1.442695
    %v563 = vpow.pop %v562
    %v564 = vmul.f32 %v554, 1.442695
    %v565 = vpow.pop %v564
    %v566 = vmul.f32 %v555, 1.442695
    %v567 = vpow.pop %v566
    %v568 = vmul.f32 %v556, 1.442695
    %v569 = vpow.pop %v568
    %v570 = vmul.f32 %v557, 1.442695
    %v571 = vpow.pop %v570
    %v572 = vmul.f32 %v558, 1.442695
    %v573 = vpow.pop %v572
    %v574 = vmul.f32 %v559, 1.442695
    %v575 = vpow.pop %v574
    %v576 = vsel %vm527, %v561, 0.0
    %577 = vadd.xlane.f32.xlu0 %v576
    %v578 = vpop.xlane.xlu0 %577
    %v579 = vsel %vm527, %v563, 0.0
    %580 = vadd.xlane.f32.xlu0 %v579
    %v581 = vpop.xlane.xlu0 %580
    %v582 = vsel %vm527, %v565, 0.0
    %583 = vadd.xlane.f32.xlu0 %v582
    %v584 = vpop.xlane.xlu0 %583
    %v585 = vsel %vm527, %v567, 0.0
    %586 = vadd.xlane.f32.xlu0 %v585
    %v587 = vpop.xlane.xlu0 %586
    %v588 = vsel %vm527, %v569, 0.0
    %589 = vadd.xlane.f32.xlu0 %v588
    %v590 = vpop.xlane.xlu0 %589
    %v591 = vsel %vm527, %v571, 0.0
    %592 = vadd.xlane.f32.xlu0 %v591
    %v593 = vpop.xlane.xlu0 %592
    %v594 = vsel %vm527, %v573, 0.0
    %595 = vadd.xlane.f32.xlu0 %v594
    %v596 = vpop.xlane.xlu0 %595
    %v597 = vsel %vm527, %v575, 0.0
    %598 = vadd.xlane.f32.xlu0 %v597
    %v599 = vpop.xlane.xlu0 %598
    %v600 = vrcp.pop %v578
    %v601 = vrcp.pop %v581
    %v602 = vrcp.pop %v584
    %v603 = vrcp.pop %v587
    %v604 = vrcp.pop %v590
    %v605 = vrcp.pop %v593
    %v606 = vrcp.pop %v596
    %v607 = vrcp.pop %v599
    %v608 = vmul.f32 %v561, %v600
    %v609 = vmul.f32 %v563, %v601
    %v610 = vmul.f32 %v565, %v602
    %v611 = vmul.f32 %v567, %v603
    %v612 = vmul.f32 %v569, %v604
    %v613 = vmul.f32 %v571, %v605
    %v614 = vmul.f32 %v573, %v606
    %v615 = vmul.f32 %v575, %v607
    %v616 = vpack.c.bf16 %v608, %v608
    %v617 = vpack.c.bf16 %v609, %v609
    %v618 = vpack.c.bf16 %v610, %v610
    %v619 = vpack.c.bf16 %v611, %v611
    %v620 = vpack.c.bf16 %v612, %v612
    %v621 = vpack.c.bf16 %v613, %v613
    %v622 = vpack.c.bf16 %v614, %v614
    %v623 = vpack.c.bf16 %v615, %v615
    %v626 = vunpack.c.l.b16 %v616
    %v627 = vunpack.c.l.b16 %v617
    %v628 = vpack.c.b16 %v627, %v626
    %v631 = vunpack.c.l.b16 %v390
    %v632 = vunpack.c.l.b16 %v391
    %v633 = vpack.c.b16 %v632, %v631
    %v636 = vsel %vm527, %v628, 0
    %638 = vmatpush.bf16.msra.mxu0 0
    %639 = vmatpush.bf16.msra.mxu0 0
    %640 = vmatpush.bf16.msra.mxu0 0
    %641 = vmatpush.bf16.msra.mxu0 0
    %642 = vmatpush.bf16.msra.mxu0 0
    %643 = vmatpush.bf16.msra.mxu0 0
    %644 = vmatpush.bf16.msra.mxu0 0
    %645 = vmatpush.bf16.msra.mxu0 %v633
    %646 = vmatmul.bf16.gmra.mxu0 %v636
    %v647 = vpop.f32.mrf.mxu0
    %v648 = vadd.f32 0.0, %v647
    %v649 = vpop.f32.mrf.mxu0
    %v650 = vadd.f32 0.0, %v649
    %651 = vdwg.mxu0
    %v654 = vunpack.c.l.b16 %v618
    %v655 = vunpack.c.l.b16 %v619
    %v656 = vpack.c.b16 %v655, %v654
    %v659 = vunpack.c.l.b16 %v392
    %v660 = vunpack.c.l.b16 %v393
    %v661 = vpack.c.b16 %v660, %v659
    %v664 = vsel %vm527, %v656, 0
    %666 = vmatpush.bf16.msra.mxu0 0
    %667 = vmatpush.bf16.msra.mxu0 0
    %668 = vmatpush.bf16.msra.mxu0 0
    %669 = vmatpush.bf16.msra.mxu0 0
    %670 = vmatpush.bf16.msra.mxu0 0
    %671 = vmatpush.bf16.msra.mxu0 0
    %672 = vmatpush.bf16.msra.mxu0 0
    %673 = vmatpush.bf16.msra.mxu0 %v661
    %674 = vmatmul.bf16.gmra.mxu0 %v664
    %v675 = vpop.f32.mrf.mxu0
    %v676 = vadd.f32 0.0, %v675
    %v677 = vpop.f32.mrf.mxu0
    %v678 = vadd.f32 0.0, %v677
    %679 = vdwg.mxu0
    %v682 = vunpack.c.l.b16 %v620
    %v683 = vunpack.c.l.b16 %v621
    %v684 = vpack.c.b16 %v683, %v682
    %v687 = vunpack.c.l.b16 %v394
    %v688 = vunpack.c.l.b16 %v395
    %v689 = vpack.c.b16 %v688, %v687
    %v692 = vsel %vm527, %v684, 0
    %694 = vmatpush.bf16.msra.mxu0 0
    %695 = vmatpush.bf16.msra.mxu0 0
    %696 = vmatpush.bf16.msra.mxu0 0
    %697 = vmatpush.bf16.msra.mxu0 0
    %698 = vmatpush.bf16.msra.mxu0 0
    %699 = vmatpush.bf16.msra.mxu0 0
    %700 = vmatpush.bf16.msra.mxu0 0
    %701 = vmatpush.bf16.msra.mxu0 %v689
    %702 = vmatmul.bf16.gmra.mxu0 %v692
    %v703 = vpop.f32.mrf.mxu0
    %v704 = vadd.f32 0.0, %v703
    %v705 = vpop.f32.mrf.mxu0
    %v706 = vadd.f32 0.0, %v705
    %707 = vdwg.mxu0
    %v710 = vunpack.c.l.b16 %v622
    %v711 = vunpack.c.l.b16 %v623
    %v712 = vpack.c.b16 %v711, %v710
    %v715 = vunpack.c.l.b16 %v396
    %v716 = vunpack.c.l.b16 %v397
    %v717 = vpack.c.b16 %v716, %v715
    %v720 = vsel %vm527, %v712, 0
    %722 = vmatpush.bf16.msra.mxu0 0
    %723 = vmatpush.bf16.msra.mxu0 0
    %724 = vmatpush.bf16.msra.mxu0 0
    %725 = vmatpush.bf16.msra.mxu0 0
    %726 = vmatpush.bf16.msra.mxu0 0
    %727 = vmatpush.bf16.msra.mxu0 0
    %728 = vmatpush.bf16.msra.mxu0 0
    %729 = vmatpush.bf16.msra.mxu0 %v717
    %730 = vmatmul.bf16.gmra.mxu0 %v720
    %v731 = vpop.f32.mrf.mxu0
    %v732 = vadd.f32 0.0, %v731
    %v733 = vpop.f32.mrf.mxu0
    %v734 = vadd.f32 0.0, %v733
    %735 = vdwg.mxu0
    %736 = vrot.lane.b32.xlu0 %v402, 96
    %v737 = vpop.permute.xlu0 %736
    %738 = vrot.lane.b32.xlu0 %v407, 96
    %v739 = vpop.permute.xlu0 %738
    %v741 = vsel %vm408, %v737, 0
    %v744 = vsel %vm408, %v739, 0
    %746 = vmatpush.bf16.xpose.msra.mxu0 0
    %747 = vmatpush.bf16.xpose.msra.mxu0 0
    %748 = vmatpush.bf16.xpose.msra.mxu0 0
    %749 = vmatpush.bf16.xpose.msra.mxu0 0
    %750 = vmatpush.bf16.xpose.msra.mxu0 0
    %751 = vmatpush.bf16.xpose.msra.mxu0 0
    %752 = vmatpush.bf16.xpose.msra.mxu0 0
    %753 = vmatpush.bf16.xpose.msra.mxu0 %v744
    %754 = vmatmul.bf16.gmra.mxu0 %v741
    %v755 = vpop.f32.mrf.mxu0
    %v756 = vadd.f32 0.0, %v755
    %v757 = vpop.f32.mrf.mxu0
    %v758 = vadd.f32 0.0, %v757
    %759 = vdwg.mxu0
    %760 = vrot.lane.b32.xlu0 %v433, 96
    %v761 = vpop.permute.xlu0 %760
    %762 = vrot.lane.b32.xlu0 %v438, 96
    %v763 = vpop.permute.xlu0 %762
    %v765 = vsel %vm408, %v761, 0
    %v768 = vsel %vm408, %v763, 0
    %770 = vmatpush.bf16.xpose.msra.mxu0 0
    %771 = vmatpush.bf16.xpose.msra.mxu0 0
    %772 = vmatpush.bf16.xpose.msra.mxu0 0
    %773 = vmatpush.bf16.xpose.msra.mxu0 0
    %774 = vmatpush.bf16.xpose.msra.mxu0 0
    %775 = vmatpush.bf16.xpose.msra.mxu0 0
    %776 = vmatpush.bf16.xpose.msra.mxu0 0
    %777 = vmatpush.bf16.xpose.msra.mxu0 %v768
    %778 = vmatmul.bf16.gmra.mxu0 %v765
    %v779 = vpop.f32.mrf.mxu0
    %v780 = vadd.f32 0.0, %v779
    %v781 = vpop.f32.mrf.mxu0
    %v782 = vadd.f32 0.0, %v781
    %783 = vdwg.mxu0
    %784 = vrot.lane.b32.xlu0 %v463, 96
    %v785 = vpop.permute.xlu0 %784
    %786 = vrot.lane.b32.xlu0 %v468, 96
    %v787 = vpop.permute.xlu0 %786
    %v789 = vsel %vm408, %v785, 0
    %v792 = vsel %vm408, %v787, 0
    %794 = vmatpush.bf16.xpose.msra.mxu0 0
    %795 = vmatpush.bf16.xpose.msra.mxu0 0
    %796 = vmatpush.bf16.xpose.msra.mxu0 0
    %797 = vmatpush.bf16.xpose.msra.mxu0 0
    %798 = vmatpush.bf16.xpose.msra.mxu0 0
    %799 = vmatpush.bf16.xpose.msra.mxu0 0
    %800 = vmatpush.bf16.xpose.msra.mxu0 0
    %801 = vmatpush.bf16.xpose.msra.mxu0 %v792
    %802 = vmatmul.bf16.gmra.mxu0 %v789
    %v803 = vpop.f32.mrf.mxu0
    %v804 = vadd.f32 0.0, %v803
    %v805 = vpop.f32.mrf.mxu0
    %v806 = vadd.f32 0.0, %v805
    %807 = vdwg.mxu0
    %808 = vrot.lane.b32.xlu0 %v493, 96
    %v809 = vpop.permute.xlu0 %808
    %810 = vrot.lane.b32.xlu0 %v498, 96
    %v811 = vpop.permute.xlu0 %810
    %v813 = vsel %vm408, %v809, 0
    %v816 = vsel %vm408, %v811, 0
    %818 = vmatpush.bf16.xpose.msra.mxu0 0
    %819 = vmatpush.bf16.xpose.msra.mxu0 0
    %820 = vmatpush.bf16.xpose.msra.mxu0 0
    %821 = vmatpush.bf16.xpose.msra.mxu0 0
    %822 = vmatpush.bf16.xpose.msra.mxu0 0
    %823 = vmatpush.bf16.xpose.msra.mxu0 0
    %824 = vmatpush.bf16.xpose.msra.mxu0 0
    %825 = vmatpush.bf16.xpose.msra.mxu0 %v816
    %826 = vmatmul.bf16.gmra.mxu0 %v813
    %v827 = vpop.f32.mrf.mxu0
    %v828 = vadd.f32 0.0, %v827
    %v829 = vpop.f32.mrf.mxu0
    %v830 = vadd.f32 0.0, %v829
    %831 = vdwg.mxu0
    %v832 = vmul.f32 %v756, 0.17677669
    %v833 = vmul.f32 %v758, 0.17677669
    %v834 = vmul.f32 %v780, 0.17677669
    %v835 = vmul.f32 %v782, 0.17677669
    %v836 = vmul.f32 %v804, 0.17677669
    %v837 = vmul.f32 %v806, 0.17677669
    %v838 = vmul.f32 %v828, 0.17677669
    %v839 = vmul.f32 %v830, 0.17677669
    %v840 = vsel %vm527, %v832, -inf
    %841 = vmax.xlane.f32.xlu0 %v840
    %v842 = vpop.xlane.xlu0 %841
    %v843 = vsel %vm527, %v833, -inf
    %844 = vmax.xlane.f32.xlu0 %v843
    %v845 = vpop.xlane.xlu0 %844
    %v846 = vsel %vm527, %v834, -inf
    %847 = vmax.xlane.f32.xlu0 %v846
    %v848 = vpop.xlane.xlu0 %847
    %v849 = vsel %vm527, %v835, -inf
    %850 = vmax.xlane.f32.xlu0 %v849
    %v851 = vpop.xlane.xlu0 %850
    %v852 = vsel %vm527, %v836, -inf
    %853 = vmax.xlane.f32.xlu0 %v852
    %v854 = vpop.xlane.xlu0 %853
    %v855 = vsel %vm527, %v837, -inf
    %856 = vmax.xlane.f32.xlu0 %v855
    %v857 = vpop.xlane.xlu0 %856
    %v858 = vsel %vm527, %v838, -inf
    %859 = vmax.xlane.f32.xlu0 %v858
    %v860 = vpop.xlane.xlu0 %859
    %v861 = vsel %vm527, %v839, -inf
    %862 = vmax.xlane.f32.xlu0 %v861
    %v863 = vpop.xlane.xlu0 %862
    %v864 = vsub.f32 %v832, %v842
    %v865 = vsub.f32 %v833, %v845
    %v866 = vsub.f32 %v834, %v848
    %v867 = vsub.f32 %v835, %v851
    %v868 = vsub.f32 %v836, %v854
    %v869 = vsub.f32 %v837, %v857
    %v870 = vsub.f32 %v838, %v860
    %v871 = vsub.f32 %v839, %v863
    %v872 = vmul.f32 %v864, 1.442695
    %v873 = vpow.pop %v872
    %v874 = vmul.f32 %v865, 1.442695
    %v875 = vpow.pop %v874
    %v876 = vmul.f32 %v866, 1.442695
    %v877 = vpow.pop %v876
    %v878 = vmul.f32 %v867, 1.442695
    %v879 = vpow.pop %v878
    %v880 = vmul.f32 %v868, 1.442695
    %v881 = vpow.pop %v880
    %v882 = vmul.f32 %v869, 1.442695
    %v883 = vpow.pop %v882
    %v884 = vmul.f32 %v870, 1.442695
    %v885 = vpow.pop %v884
    %v886 = vmul.f32 %v871, 1.442695
    %v887 = vpow.pop %v886
    %v888 = vsel %vm527, %v873, 0.0
    %889 = vadd.xlane.f32.xlu0 %v888
    %v890 = vpop.xlane.xlu0 %889
    %v891 = vsel %vm527, %v875, 0.0
    %892 = vadd.xlane.f32.xlu0 %v891
    %v893 = vpop.xlane.xlu0 %892
    %v894 = vsel %vm527, %v877, 0.0
    %895 = vadd.xlane.f32.xlu0 %v894
    %v896 = vpop.xlane.xlu0 %895
    %v897 = vsel %vm527, %v879, 0.0
    %898 = vadd.xlane.f32.xlu0 %v897
    %v899 = vpop.xlane.xlu0 %898
    %v900 = vsel %vm527, %v881, 0.0
    %901 = vadd.xlane.f32.xlu0 %v900
    %v902 = vpop.xlane.xlu0 %901
    %v903 = vsel %vm527, %v883, 0.0
    %904 = vadd.xlane.f32.xlu0 %v903
    %v905 = vpop.xlane.xlu0 %904
    %v906 = vsel %vm527, %v885, 0.0
    %907 = vadd.xlane.f32.xlu0 %v906
    %v908 = vpop.xlane.xlu0 %907
    %v909 = vsel %vm527, %v887, 0.0
    %910 = vadd.xlane.f32.xlu0 %v909
    %v911 = vpop.xlane.xlu0 %910
    %v912 = vrcp.pop %v890
    %v913 = vrcp.pop %v893
    %v914 = vrcp.pop %v896
    %v915 = vrcp.pop %v899
    %v916 = vrcp.pop %v902
    %v917 = vrcp.pop %v905
    %v918 = vrcp.pop %v908
    %v919 = vrcp.pop %v911
    %v920 = vmul.f32 %v873, %v912
    %v921 = vmul.f32 %v875, %v913
    %v922 = vmul.f32 %v877, %v914
    %v923 = vmul.f32 %v879, %v915
    %v924 = vmul.f32 %v881, %v916
    %v925 = vmul.f32 %v883, %v917
    %v926 = vmul.f32 %v885, %v918
    %v927 = vmul.f32 %v887, %v919
    %v928 = vpack.c.bf16 %v920, %v920
    %v929 = vpack.c.bf16 %v921, %v921
    %v930 = vpack.c.bf16 %v922, %v922
    %v931 = vpack.c.bf16 %v923, %v923
    %v932 = vpack.c.bf16 %v924, %v924
    %v933 = vpack.c.bf16 %v925, %v925
    %v934 = vpack.c.bf16 %v926, %v926
    %v935 = vpack.c.bf16 %v927, %v927
    %v938 = vunpack.c.l.b16 %v928
    %v939 = vunpack.c.l.b16 %v929
    %v940 = vpack.c.b16 %v939, %v938
    %941 = vrot.lane.b32.xlu0 %v633, 96
    %v942 = vpop.permute.xlu0 %941
    %v945 = vsel %vm527, %v940, 0
    %947 = vmatpush.bf16.msra.mxu0 0
    %948 = vmatpush.bf16.msra.mxu0 0
    %949 = vmatpush.bf16.msra.mxu0 0
    %950 = vmatpush.bf16.msra.mxu0 0
    %951 = vmatpush.bf16.msra.mxu0 0
    %952 = vmatpush.bf16.msra.mxu0 0
    %953 = vmatpush.bf16.msra.mxu0 0
    %954 = vmatpush.bf16.msra.mxu0 %v942
    %955 = vmatmul.bf16.gmra.mxu0 %v945
    %v956 = vpop.f32.mrf.mxu0
    %v957 = vadd.f32 0.0, %v956
    %v958 = vpop.f32.mrf.mxu0
    %v959 = vadd.f32 0.0, %v958
    %960 = vdwg.mxu0
    %v963 = vunpack.c.l.b16 %v930
    %v964 = vunpack.c.l.b16 %v931
    %v965 = vpack.c.b16 %v964, %v963
    %966 = vrot.lane.b32.xlu0 %v661, 96
    %v967 = vpop.permute.xlu0 %966
    %v970 = vsel %vm527, %v965, 0
    %972 = vmatpush.bf16.msra.mxu0 0
    %973 = vmatpush.bf16.msra.mxu0 0
    %974 = vmatpush.bf16.msra.mxu0 0
    %975 = vmatpush.bf16.msra.mxu0 0
    %976 = vmatpush.bf16.msra.mxu0 0
    %977 = vmatpush.bf16.msra.mxu0 0
    %978 = vmatpush.bf16.msra.mxu0 0
    %979 = vmatpush.bf16.msra.mxu0 %v967
    %980 = vmatmul.bf16.gmra.mxu0 %v970
    %v981 = vpop.f32.mrf.mxu0
    %v982 = vadd.f32 0.0, %v981
    %v983 = vpop.f32.mrf.mxu0
    %v984 = vadd.f32 0.0, %v983
    %985 = vdwg.mxu0
    %v988 = vunpack.c.l.b16 %v932
    %v989 = vunpack.c.l.b16 %v933
    %v990 = vpack.c.b16 %v989, %v988
    %991 = vrot.lane.b32.xlu0 %v689, 96
    %v992 = vpop.permute.xlu0 %991
    %v995 = vsel %vm527, %v990, 0
    %997 = vmatpush.bf16.msra.mxu0 0
    %998 = vmatpush.bf16.msra.mxu0 0
    %999 = vmatpush.bf16.msra.mxu0 0
    %1000 = vmatpush.bf16.msra.mxu0 0
    %1001 = vmatpush.bf16.msra.mxu0 0
    %1002 = vmatpush.bf16.msra.mxu0 0
    %1003 = vmatpush.bf16.msra.mxu0 0
    %1004 = vmatpush.bf16.msra.mxu0 %v992
    %1005 = vmatmul.bf16.gmra.mxu0 %v995
    %v1006 = vpop.f32.mrf.mxu0
    %v1007 = vadd.f32 0.0, %v1006
    %v1008 = vpop.f32.mrf.mxu0
    %v1009 = vadd.f32 0.0, %v1008
    %1010 = vdwg.mxu0
    %v1013 = vunpack.c.l.b16 %v934
    %v1014 = vunpack.c.l.b16 %v935
    %v1015 = vpack.c.b16 %v1014, %v1013
    %1016 = vrot.lane.b32.xlu0 %v717, 96
    %v1017 = vpop.permute.xlu0 %1016
    %v1020 = vsel %vm527, %v1015, 0
    %1022 = vmatpush.bf16.msra.mxu0 0
    %1023 = vmatpush.bf16.msra.mxu0 0
    %1024 = vmatpush.bf16.msra.mxu0 0
    %1025 = vmatpush.bf16.msra.mxu0 0
    %1026 = vmatpush.bf16.msra.mxu0 0
    %1027 = vmatpush.bf16.msra.mxu0 0
    %1028 = vmatpush.bf16.msra.mxu0 0
    %1029 = vmatpush.bf16.msra.mxu0 %v1017
    %1030 = vmatmul.bf16.gmra.mxu0 %v1020
    %v1031 = vpop.f32.mrf.mxu0
    %v1032 = vadd.f32 0.0, %v1031
    %v1033 = vpop.f32.mrf.mxu0
    %v1034 = vadd.f32 0.0, %v1033
    %1035 = vdwg.mxu0
    %1036 = vrot.lane.b32.xlu0 %v402, 64
    %v1037 = vpop.permute.xlu0 %1036
    %1038 = vrot.lane.b32.xlu0 %v407, 64
    %v1039 = vpop.permute.xlu0 %1038
    %v1041 = vsel %vm408, %v1037, 0
    %v1044 = vsel %vm408, %v1039, 0
    %1046 = vmatpush.bf16.xpose.msra.mxu0 0
    %1047 = vmatpush.bf16.xpose.msra.mxu0 0
    %1048 = vmatpush.bf16.xpose.msra.mxu0 0
    %1049 = vmatpush.bf16.xpose.msra.mxu0 0
    %1050 = vmatpush.bf16.xpose.msra.mxu0 0
    %1051 = vmatpush.bf16.xpose.msra.mxu0 0
    %1052 = vmatpush.bf16.xpose.msra.mxu0 0
    %1053 = vmatpush.bf16.xpose.msra.mxu0 %v1044
    %1054 = vmatmul.bf16.gmra.mxu0 %v1041
    %v1055 = vpop.f32.mrf.mxu0
    %v1056 = vadd.f32 0.0, %v1055
    %v1057 = vpop.f32.mrf.mxu0
    %v1058 = vadd.f32 0.0, %v1057
    %1059 = vdwg.mxu0
    %1060 = vrot.lane.b32.xlu0 %v433, 64
    %v1061 = vpop.permute.xlu0 %1060
    %1062 = vrot.lane.b32.xlu0 %v438, 64
    %v1063 = vpop.permute.xlu0 %1062
    %v1065 = vsel %vm408, %v1061, 0
    %v1068 = vsel %vm408, %v1063, 0
    %1070 = vmatpush.bf16.xpose.msra.mxu0 0
    %1071 = vmatpush.bf16.xpose.msra.mxu0 0
    %1072 = vmatpush.bf16.xpose.msra.mxu0 0
    %1073 = vmatpush.bf16.xpose.msra.mxu0 0
    %1074 = vmatpush.bf16.xpose.msra.mxu0 0
    %1075 = vmatpush.bf16.xpose.msra.mxu0 0
    %1076 = vmatpush.bf16.xpose.msra.mxu0 0
    %1077 = vmatpush.bf16.xpose.msra.mxu0 %v1068
    %1078 = vmatmul.bf16.gmra.mxu0 %v1065
    %v1079 = vpop.f32.mrf.mxu0
    %v1080 = vadd.f32 0.0, %v1079
    %v1081 = vpop.f32.mrf.mxu0
    %v1082 = vadd.f32 0.0, %v1081
    %1083 = vdwg.mxu0
    %1084 = vrot.lane.b32.xlu0 %v463, 64
    %v1085 = vpop.permute.xlu0 %1084
    %1086 = vrot.lane.b32.xlu0 %v468, 64
    %v1087 = vpop.permute.xlu0 %1086
    %v1089 = vsel %vm408, %v1085, 0
    %v1092 = vsel %vm408, %v1087, 0
    %1094 = vmatpush.bf16.xpose.msra.mxu0 0
    %1095 = vmatpush.bf16.xpose.msra.mxu0 0
    %1096 = vmatpush.bf16.xpose.msra.mxu0 0
    %1097 = vmatpush.bf16.xpose.msra.mxu0 0
    %1098 = vmatpush.bf16.xpose.msra.mxu0 0
    %1099 = vmatpush.bf16.xpose.msra.mxu0 0
    %1100 = vmatpush.bf16.xpose.msra.mxu0 0
    %1101 = vmatpush.bf16.xpose.msra.mxu0 %v1092
    %1102 = vmatmul.bf16.gmra.mxu0 %v1089
    %v1103 = vpop.f32.mrf.mxu0
    %v1104 = vadd.f32 0.0, %v1103
    %v1105 = vpop.f32.mrf.mxu0
    %v1106 = vadd.f32 0.0, %v1105
    %1107 = vdwg.mxu0
    %1108 = vrot.lane.b32.xlu0 %v493, 64
    %v1109 = vpop.permute.xlu0 %1108
    %1110 = vrot.lane.b32.xlu0 %v498, 64
    %v1111 = vpop.permute.xlu0 %1110
    %v1113 = vsel %vm408, %v1109, 0
    %v1116 = vsel %vm408, %v1111, 0
    %1118 = vmatpush.bf16.xpose.msra.mxu0 0
    %1119 = vmatpush.bf16.xpose.msra.mxu0 0
    %1120 = vmatpush.bf16.xpose.msra.mxu0 0
    %1121 = vmatpush.bf16.xpose.msra.mxu0 0
    %1122 = vmatpush.bf16.xpose.msra.mxu0 0
    %1123 = vmatpush.bf16.xpose.msra.mxu0 0
    %1124 = vmatpush.bf16.xpose.msra.mxu0 0
    %1125 = vmatpush.bf16.xpose.msra.mxu0 %v1116
    %1126 = vmatmul.bf16.gmra.mxu0 %v1113
    %v1127 = vpop.f32.mrf.mxu0
    %v1128 = vadd.f32 0.0, %v1127
    %v1129 = vpop.f32.mrf.mxu0
    %v1130 = vadd.f32 0.0, %v1129
    %1131 = vdwg.mxu0
    %v1132 = vmul.f32 %v1056, 0.17677669
    %v1133 = vmul.f32 %v1058, 0.17677669
    %v1134 = vmul.f32 %v1080, 0.17677669
    %v1135 = vmul.f32 %v1082, 0.17677669
    %v1136 = vmul.f32 %v1104, 0.17677669
    %v1137 = vmul.f32 %v1106, 0.17677669
    %v1138 = vmul.f32 %v1128, 0.17677669
    %v1139 = vmul.f32 %v1130, 0.17677669
    %v1140 = vsel %vm527, %v1132, -inf
    %1141 = vmax.xlane.f32.xlu0 %v1140
    %v1142 = vpop.xlane.xlu0 %1141
    %v1143 = vsel %vm527, %v1133, -inf
    %1144 = vmax.xlane.f32.xlu0 %v1143
    %v1145 = vpop.xlane.xlu0 %1144
    %v1146 = vsel %vm527, %v1134, -inf
    %1147 = vmax.xlane.f32.xlu0 %v1146
    %v1148 = vpop.xlane.xlu0 %1147
    %v1149 = vsel %vm527, %v1135, -inf
    %1150 = vmax.xlane.f32.xlu0 %v1149
    %v1151 = vpop.xlane.xlu0 %1150
    %v1152 = vsel %vm527, %v1136, -inf
    %1153 = vmax.xlane.f32.xlu0 %v1152
    %v1154 = vpop.xlane.xlu0 %1153
    %v1155 = vsel %vm527, %v1137, -inf
    %1156 = vmax.xlane.f32.xlu0 %v1155
    %v1157 = vpop.xlane.xlu0 %1156
    %v1158 = vsel %vm527, %v1138, -inf
    %1159 = vmax.xlane.f32.xlu0 %v1158
    %v1160 = vpop.xlane.xlu0 %1159
    %v1161 = vsel %vm527, %v1139, -inf
    %1162 = vmax.xlane.f32.xlu0 %v1161
    %v1163 = vpop.xlane.xlu0 %1162
    %v1164 = vsub.f32 %v1132, %v1142
    %v1165 = vsub.f32 %v1133, %v1145
    %v1166 = vsub.f32 %v1134, %v1148
    %v1167 = vsub.f32 %v1135, %v1151
    %v1168 = vsub.f32 %v1136, %v1154
    %v1169 = vsub.f32 %v1137, %v1157
    %v1170 = vsub.f32 %v1138, %v1160
    %v1171 = vsub.f32 %v1139, %v1163
    %v1172 = vmul.f32 %v1164, 1.442695
    %v1173 = vpow.pop %v1172
    %v1174 = vmul.f32 %v1165, 1.442695
    %v1175 = vpow.pop %v1174
    %v1176 = vmul.f32 %v1166, 1.442695
    %v1177 = vpow.pop %v1176
    %v1178 = vmul.f32 %v1167, 1.442695
    %v1179 = vpow.pop %v1178
    %v1180 = vmul.f32 %v1168, 1.442695
    %v1181 = vpow.pop %v1180
    %v1182 = vmul.f32 %v1169, 1.442695
    %v1183 = vpow.pop %v1182
    %v1184 = vmul.f32 %v1170, 1.442695
    %v1185 = vpow.pop %v1184
    %v1186 = vmul.f32 %v1171, 1.442695
    %v1187 = vpow.pop %v1186
    %v1188 = vsel %vm527, %v1173, 0.0
    %1189 = vadd.xlane.f32.xlu0 %v1188
    %v1190 = vpop.xlane.xlu0 %1189
    %v1191 = vsel %vm527, %v1175, 0.0
    %1192 = vadd.xlane.f32.xlu0 %v1191
    %v1193 = vpop.xlane.xlu0 %1192
    %v1194 = vsel %vm527, %v1177, 0.0
    %1195 = vadd.xlane.f32.xlu0 %v1194
    %v1196 = vpop.xlane.xlu0 %1195
    %v1197 = vsel %vm527, %v1179, 0.0
    %1198 = vadd.xlane.f32.xlu0 %v1197
    %v1199 = vpop.xlane.xlu0 %1198
    %v1200 = vsel %vm527, %v1181, 0.0
    %1201 = vadd.xlane.f32.xlu0 %v1200
    %v1202 = vpop.xlane.xlu0 %1201
    %v1203 = vsel %vm527, %v1183, 0.0
    %1204 = vadd.xlane.f32.xlu0 %v1203
    %v1205 = vpop.xlane.xlu0 %1204
    %v1206 = vsel %vm527, %v1185, 0.0
    %1207 = vadd.xlane.f32.xlu0 %v1206
    %v1208 = vpop.xlane.xlu0 %1207
    %v1209 = vsel %vm527, %v1187, 0.0
    %1210 = vadd.xlane.f32.xlu0 %v1209
    %v1211 = vpop.xlane.xlu0 %1210
    %v1212 = vrcp.pop %v1190
    %v1213 = vrcp.pop %v1193
    %v1214 = vrcp.pop %v1196
    %v1215 = vrcp.pop %v1199
    %v1216 = vrcp.pop %v1202
    %v1217 = vrcp.pop %v1205
    %v1218 = vrcp.pop %v1208
    %v1219 = vrcp.pop %v1211
    %v1220 = vmul.f32 %v1173, %v1212
    %v1221 = vmul.f32 %v1175, %v1213
    %v1222 = vmul.f32 %v1177, %v1214
    %v1223 = vmul.f32 %v1179, %v1215
    %v1224 = vmul.f32 %v1181, %v1216
    %v1225 = vmul.f32 %v1183, %v1217
    %v1226 = vmul.f32 %v1185, %v1218
    %v1227 = vmul.f32 %v1187, %v1219
    %v1228 = vpack.c.bf16 %v1220, %v1220
    %v1229 = vpack.c.bf16 %v1221, %v1221
    %v1230 = vpack.c.bf16 %v1222, %v1222
    %v1231 = vpack.c.bf16 %v1223, %v1223
    %v1232 = vpack.c.bf16 %v1224, %v1224
    %v1233 = vpack.c.bf16 %v1225, %v1225
    %v1234 = vpack.c.bf16 %v1226, %v1226
    %v1235 = vpack.c.bf16 %v1227, %v1227
    %v1238 = vunpack.c.l.b16 %v1228
    %v1239 = vunpack.c.l.b16 %v1229
    %v1240 = vpack.c.b16 %v1239, %v1238
    %1241 = vrot.lane.b32.xlu0 %v633, 64
    %v1242 = vpop.permute.xlu0 %1241
    %v1245 = vsel %vm527, %v1240, 0
    %1247 = vmatpush.bf16.msra.mxu0 0
    %1248 = vmatpush.bf16.msra.mxu0 0
    %1249 = vmatpush.bf16.msra.mxu0 0
    %1250 = vmatpush.bf16.msra.mxu0 0
    %1251 = vmatpush.bf16.msra.mxu0 0
    %1252 = vmatpush.bf16.msra.mxu0 0
    %1253 = vmatpush.bf16.msra.mxu0 0
    %1254 = vmatpush.bf16.msra.mxu0 %v1242
    %1255 = vmatmul.bf16.gmra.mxu0 %v1245
    %v1256 = vpop.f32.mrf.mxu0
    %v1257 = vadd.f32 0.0, %v1256
    %v1258 = vpop.f32.mrf.mxu0
    %v1259 = vadd.f32 0.0, %v1258
    %1260 = vdwg.mxu0
    %v1263 = vunpack.c.l.b16 %v1230
    %v1264 = vunpack.c.l.b16 %v1231
    %v1265 = vpack.c.b16 %v1264, %v1263
    %1266 = vrot.lane.b32.xlu0 %v661, 64
    %v1267 = vpop.permute.xlu0 %1266
    %v1270 = vsel %vm527, %v1265, 0
    %1272 = vmatpush.bf16.msra.mxu0 0
    %1273 = vmatpush.bf16.msra.mxu0 0
    %1274 = vmatpush.bf16.msra.mxu0 0
    %1275 = vmatpush.bf16.msra.mxu0 0
    %1276 = vmatpush.bf16.msra.mxu0 0
    %1277 = vmatpush.bf16.msra.mxu0 0
    %1278 = vmatpush.bf16.msra.mxu0 0
    %1279 = vmatpush.bf16.msra.mxu0 %v1267
    %1280 = vmatmul.bf16.gmra.mxu0 %v1270
    %v1281 = vpop.f32.mrf.mxu0
    %v1282 = vadd.f32 0.0, %v1281
    %v1283 = vpop.f32.mrf.mxu0
    %v1284 = vadd.f32 0.0, %v1283
    %1285 = vdwg.mxu0
    %v1288 = vunpack.c.l.b16 %v1232
    %v1289 = vunpack.c.l.b16 %v1233
    %v1290 = vpack.c.b16 %v1289, %v1288
    %1291 = vrot.lane.b32.xlu0 %v689, 64
    %v1292 = vpop.permute.xlu0 %1291
    %v1295 = vsel %vm527, %v1290, 0
    %1297 = vmatpush.bf16.msra.mxu0 0
    %1298 = vmatpush.bf16.msra.mxu0 0
    %1299 = vmatpush.bf16.msra.mxu0 0
    %1300 = vmatpush.bf16.msra.mxu0 0
    %1301 = vmatpush.bf16.msra.mxu0 0
    %1302 = vmatpush.bf16.msra.mxu0 0
    %1303 = vmatpush.bf16.msra.mxu0 0
    %1304 = vmatpush.bf16.msra.mxu0 %v1292
    %1305 = vmatmul.bf16.gmra.mxu0 %v1295
    %v1306 = vpop.f32.mrf.mxu0
    %v1307 = vadd.f32 0.0, %v1306
    %v1308 = vpop.f32.mrf.mxu0
    %v1309 = vadd.f32 0.0, %v1308
    %1310 = vdwg.mxu0
    %v1313 = vunpack.c.l.b16 %v1234
    %v1314 = vunpack.c.l.b16 %v1235
    %v1315 = vpack.c.b16 %v1314, %v1313
    %1316 = vrot.lane.b32.xlu0 %v717, 64
    %v1317 = vpop.permute.xlu0 %1316
    %v1320 = vsel %vm527, %v1315, 0
    %1322 = vmatpush.bf16.msra.mxu0 0
    %1323 = vmatpush.bf16.msra.mxu0 0
    %1324 = vmatpush.bf16.msra.mxu0 0
    %1325 = vmatpush.bf16.msra.mxu0 0
    %1326 = vmatpush.bf16.msra.mxu0 0
    %1327 = vmatpush.bf16.msra.mxu0 0
    %1328 = vmatpush.bf16.msra.mxu0 0
    %1329 = vmatpush.bf16.msra.mxu0 %v1317
    %1330 = vmatmul.bf16.gmra.mxu0 %v1320
    %v1331 = vpop.f32.mrf.mxu0
    %v1332 = vadd.f32 0.0, %v1331
    %v1333 = vpop.f32.mrf.mxu0
    %v1334 = vadd.f32 0.0, %v1333
    %1335 = vdwg.mxu0
    %1336 = vrot.lane.b32.xlu0 %v402, 32
    %v1337 = vpop.permute.xlu0 %1336
    %1338 = vrot.lane.b32.xlu0 %v407, 32
    %v1339 = vpop.permute.xlu0 %1338
    %v1341 = vsel %vm408, %v1337, 0
    %v1344 = vsel %vm408, %v1339, 0
    %1346 = vmatpush.bf16.xpose.msra.mxu0 0
    %1347 = vmatpush.bf16.xpose.msra.mxu0 0
    %1348 = vmatpush.bf16.xpose.msra.mxu0 0
    %1349 = vmatpush.bf16.xpose.msra.mxu0 0
    %1350 = vmatpush.bf16.xpose.msra.mxu0 0
    %1351 = vmatpush.bf16.xpose.msra.mxu0 0
    %1352 = vmatpush.bf16.xpose.msra.mxu0 0
    %1353 = vmatpush.bf16.xpose.msra.mxu0 %v1344
    %1354 = vmatmul.bf16.gmra.mxu0 %v1341
    %v1355 = vpop.f32.mrf.mxu0
    %v1356 = vadd.f32 0.0, %v1355
    %v1357 = vpop.f32.mrf.mxu0
    %v1358 = vadd.f32 0.0, %v1357
    %1359 = vdwg.mxu0
    %1360 = vrot.lane.b32.xlu0 %v433, 32
    %v1361 = vpop.permute.xlu0 %1360
    %1362 = vrot.lane.b32.xlu0 %v438, 32
    %v1363 = vpop.permute.xlu0 %1362
    %v1365 = vsel %vm408, %v1361, 0
    %v1368 = vsel %vm408, %v1363, 0
    %1370 = vmatpush.bf16.xpose.msra.mxu0 0
    %1371 = vmatpush.bf16.xpose.msra.mxu0 0
    %1372 = vmatpush.bf16.xpose.msra.mxu0 0
    %1373 = vmatpush.bf16.xpose.msra.mxu0 0
    %1374 = vmatpush.bf16.xpose.msra.mxu0 0
    %1375 = vmatpush.bf16.xpose.msra.mxu0 0
    %1376 = vmatpush.bf16.xpose.msra.mxu0 0
    %1377 = vmatpush.bf16.xpose.msra.mxu0 %v1368
    %1378 = vmatmul.bf16.gmra.mxu0 %v1365
    %v1379 = vpop.f32.mrf.mxu0
    %v1380 = vadd.f32 0.0, %v1379
    %v1381 = vpop.f32.mrf.mxu0
    %v1382 = vadd.f32 0.0, %v1381
    %1383 = vdwg.mxu0
    %1384 = vrot.lane.b32.xlu0 %v463, 32
    %v1385 = vpop.permute.xlu0 %1384
    %1386 = vrot.lane.b32.xlu0 %v468, 32
    %v1387 = vpop.permute.xlu0 %1386
    %v1389 = vsel %vm408, %v1385, 0
    %v1392 = vsel %vm408, %v1387, 0
    %1394 = vmatpush.bf16.xpose.msra.mxu0 0
    %1395 = vmatpush.bf16.xpose.msra.mxu0 0
    %1396 = vmatpush.bf16.xpose.msra.mxu0 0
    %1397 = vmatpush.bf16.xpose.msra.mxu0 0
    %1398 = vmatpush.bf16.xpose.msra.mxu0 0
    %1399 = vmatpush.bf16.xpose.msra.mxu0 0
    %1400 = vmatpush.bf16.xpose.msra.mxu0 0
    %1401 = vmatpush.bf16.xpose.msra.mxu0 %v1392
    %1402 = vmatmul.bf16.gmra.mxu0 %v1389
    %v1403 = vpop.f32.mrf.mxu0
    %v1404 = vadd.f32 0.0, %v1403
    %v1405 = vpop.f32.mrf.mxu0
    %v1406 = vadd.f32 0.0, %v1405
    %1407 = vdwg.mxu0
    %1408 = vrot.lane.b32.xlu0 %v493, 32
    %v1409 = vpop.permute.xlu0 %1408
    %1410 = vrot.lane.b32.xlu0 %v498, 32
    %v1411 = vpop.permute.xlu0 %1410
    %v1413 = vsel %vm408, %v1409, 0
    %v1416 = vsel %vm408, %v1411, 0
    %1418 = vmatpush.bf16.xpose.msra.mxu0 0
    %1419 = vmatpush.bf16.xpose.msra.mxu0 0
    %1420 = vmatpush.bf16.xpose.msra.mxu0 0
    %1421 = vmatpush.bf16.xpose.msra.mxu0 0
    %1422 = vmatpush.bf16.xpose.msra.mxu0 0
    %1423 = vmatpush.bf16.xpose.msra.mxu0 0
    %1424 = vmatpush.bf16.xpose.msra.mxu0 0
    %1425 = vmatpush.bf16.xpose.msra.mxu0 %v1416
    %1426 = vmatmul.bf16.gmra.mxu0 %v1413
    %v1427 = vpop.f32.mrf.mxu0
    %v1428 = vadd.f32 0.0, %v1427
    %v1429 = vpop.f32.mrf.mxu0
    %v1430 = vadd.f32 0.0, %v1429
    %1431 = vdwg.mxu0
    %v1432 = vmul.f32 %v1356, 0.17677669
    %v1433 = vmul.f32 %v1358, 0.17677669
    %v1434 = vmul.f32 %v1380, 0.17677669
    %v1435 = vmul.f32 %v1382, 0.17677669
    %v1436 = vmul.f32 %v1404, 0.17677669
    %v1437 = vmul.f32 %v1406, 0.17677669
    %v1438 = vmul.f32 %v1428, 0.17677669
    %v1439 = vmul.f32 %v1430, 0.17677669
    %v1440 = vsel %vm527, %v1432, -inf
    %1441 = vmax.xlane.f32.xlu0 %v1440
    %v1442 = vpop.xlane.xlu0 %1441
    %v1443 = vsel %vm527, %v1433, -inf
    %1444 = vmax.xlane.f32.xlu0 %v1443
    %v1445 = vpop.xlane.xlu0 %1444
    %v1446 = vsel %vm527, %v1434, -inf
    %1447 = vmax.xlane.f32.xlu0 %v1446
    %v1448 = vpop.xlane.xlu0 %1447
    %v1449 = vsel %vm527, %v1435, -inf
    %1450 = vmax.xlane.f32.xlu0 %v1449
    %v1451 = vpop.xlane.xlu0 %1450
    %v1452 = vsel %vm527, %v1436, -inf
    %1453 = vmax.xlane.f32.xlu0 %v1452
    %v1454 = vpop.xlane.xlu0 %1453
    %v1455 = vsel %vm527, %v1437, -inf
    %1456 = vmax.xlane.f32.xlu0 %v1455
    %v1457 = vpop.xlane.xlu0 %1456
    %v1458 = vsel %vm527, %v1438, -inf
    %1459 = vmax.xlane.f32.xlu0 %v1458
    %v1460 = vpop.xlane.xlu0 %1459
    %v1461 = vsel %vm527, %v1439, -inf
    %1462 = vmax.xlane.f32.xlu0 %v1461
    %v1463 = vpop.xlane.xlu0 %1462
    %v1464 = vsub.f32 %v1432, %v1442
    %v1465 = vsub.f32 %v1433, %v1445
    %v1466 = vsub.f32 %v1434, %v1448
    %v1467 = vsub.f32 %v1435, %v1451
    %v1468 = vsub.f32 %v1436, %v1454
    %v1469 = vsub.f32 %v1437, %v1457
    %v1470 = vsub.f32 %v1438, %v1460
    %v1471 = vsub.f32 %v1439, %v1463
    %v1472 = vmul.f32 %v1464, 1.442695
    %v1473 = vpow.pop %v1472
    %v1474 = vmul.f32 %v1465, 1.442695
    %v1475 = vpow.pop %v1474
    %v1476 = vmul.f32 %v1466, 1.442695
    %v1477 = vpow.pop %v1476
    %v1478 = vmul.f32 %v1467, 1.442695
    %v1479 = vpow.pop %v1478
    %v1480 = vmul.f32 %v1468, 1.442695
    %v1481 = vpow.pop %v1480
    %v1482 = vmul.f32 %v1469, 1.442695
    %v1483 = vpow.pop %v1482
    %v1484 = vmul.f32 %v1470, 1.442695
    %v1485 = vpow.pop %v1484
    %v1486 = vmul.f32 %v1471, 1.442695
    %v1487 = vpow.pop %v1486
    %v1488 = vsel %vm527, %v1473, 0.0
    %1489 = vadd.xlane.f32.xlu0 %v1488
    %v1490 = vpop.xlane.xlu0 %1489
    %v1491 = vsel %vm527, %v1475, 0.0
    %1492 = vadd.xlane.f32.xlu0 %v1491
    %v1493 = vpop.xlane.xlu0 %1492
    %v1494 = vsel %vm527, %v1477, 0.0
    %1495 = vadd.xlane.f32.xlu0 %v1494
    %v1496 = vpop.xlane.xlu0 %1495
    %v1497 = vsel %vm527, %v1479, 0.0
    %1498 = vadd.xlane.f32.xlu0 %v1497
    %v1499 = vpop.xlane.xlu0 %1498
    %v1500 = vsel %vm527, %v1481, 0.0
    %1501 = vadd.xlane.f32.xlu0 %v1500
    %v1502 = vpop.xlane.xlu0 %1501
    %v1503 = vsel %vm527, %v1483, 0.0
    %1504 = vadd.xlane.f32.xlu0 %v1503
    %v1505 = vpop.xlane.xlu0 %1504
    %v1506 = vsel %vm527, %v1485, 0.0
    %1507 = vadd.xlane.f32.xlu0 %v1506
    %v1508 = vpop.xlane.xlu0 %1507
    %v1509 = vsel %vm527, %v1487, 0.0
    %1510 = vadd.xlane.f32.xlu0 %v1509
    %v1511 = vpop.xlane.xlu0 %1510
    %v1512 = vrcp.pop %v1490
    %v1513 = vrcp.pop %v1493
    %v1514 = vrcp.pop %v1496
    %v1515 = vrcp.pop %v1499
    %v1516 = vrcp.pop %v1502
    %v1517 = vrcp.pop %v1505
    %v1518 = vrcp.pop %v1508
    %v1519 = vrcp.pop %v1511
    %v1520 = vmul.f32 %v1473, %v1512
    %v1521 = vmul.f32 %v1475, %v1513
    %v1522 = vmul.f32 %v1477, %v1514
    %v1523 = vmul.f32 %v1479, %v1515
    %v1524 = vmul.f32 %v1481, %v1516
    %v1525 = vmul.f32 %v1483, %v1517
    %v1526 = vmul.f32 %v1485, %v1518
    %v1527 = vmul.f32 %v1487, %v1519
    %v1528 = vpack.c.bf16 %v1520, %v1520
    %v1529 = vpack.c.bf16 %v1521, %v1521
    %v1530 = vpack.c.bf16 %v1522, %v1522
    %v1531 = vpack.c.bf16 %v1523, %v1523
    %v1532 = vpack.c.bf16 %v1524, %v1524
    %v1533 = vpack.c.bf16 %v1525, %v1525
    %v1534 = vpack.c.bf16 %v1526, %v1526
    %v1535 = vpack.c.bf16 %v1527, %v1527
    %v1538 = vunpack.c.l.b16 %v1528
    %v1539 = vunpack.c.l.b16 %v1529
    %v1540 = vpack.c.b16 %v1539, %v1538
    %1541 = vrot.lane.b32.xlu0 %v633, 32
    %v1542 = vpop.permute.xlu0 %1541
    %v1545 = vsel %vm527, %v1540, 0
    %1547 = vmatpush.bf16.msra.mxu0 0
    %1548 = vmatpush.bf16.msra.mxu0 0
    %1549 = vmatpush.bf16.msra.mxu0 0
    %1550 = vmatpush.bf16.msra.mxu0 0
    %1551 = vmatpush.bf16.msra.mxu0 0
    %1552 = vmatpush.bf16.msra.mxu0 0
    %1553 = vmatpush.bf16.msra.mxu0 0
    %1554 = vmatpush.bf16.msra.mxu0 %v1542
    %1555 = vmatmul.bf16.gmra.mxu0 %v1545
    %v1556 = vpop.f32.mrf.mxu0
    %v1557 = vadd.f32 0.0, %v1556
    %v1558 = vpop.f32.mrf.mxu0
    %v1559 = vadd.f32 0.0, %v1558
    %1560 = vdwg.mxu0
    %v1563 = vunpack.c.l.b16 %v1530
    %v1564 = vunpack.c.l.b16 %v1531
    %v1565 = vpack.c.b16 %v1564, %v1563
    %1566 = vrot.lane.b32.xlu0 %v661, 32
    %v1567 = vpop.permute.xlu0 %1566
    %v1570 = vsel %vm527, %v1565, 0
    %1572 = vmatpush.bf16.msra.mxu0 0
    %1573 = vmatpush.bf16.msra.mxu0 0
    %1574 = vmatpush.bf16.msra.mxu0 0
    %1575 = vmatpush.bf16.msra.mxu0 0
    %1576 = vmatpush.bf16.msra.mxu0 0
    %1577 = vmatpush.bf16.msra.mxu0 0
    %1578 = vmatpush.bf16.msra.mxu0 0
    %1579 = vmatpush.bf16.msra.mxu0 %v1567
    %1580 = vmatmul.bf16.gmra.mxu0 %v1570
    %v1581 = vpop.f32.mrf.mxu0
    %v1582 = vadd.f32 0.0, %v1581
    %v1583 = vpop.f32.mrf.mxu0
    %v1584 = vadd.f32 0.0, %v1583
    %1585 = vdwg.mxu0
    %v1588 = vunpack.c.l.b16 %v1532
    %v1589 = vunpack.c.l.b16 %v1533
    %v1590 = vpack.c.b16 %v1589, %v1588
    %1591 = vrot.lane.b32.xlu0 %v689, 32
    %v1592 = vpop.permute.xlu0 %1591
    %v1595 = vsel %vm527, %v1590, 0
    %1597 = vmatpush.bf16.msra.mxu0 0
    %1598 = vmatpush.bf16.msra.mxu0 0
    %1599 = vmatpush.bf16.msra.mxu0 0
    %1600 = vmatpush.bf16.msra.mxu0 0
    %1601 = vmatpush.bf16.msra.mxu0 0
    %1602 = vmatpush.bf16.msra.mxu0 0
    %1603 = vmatpush.bf16.msra.mxu0 0
    %1604 = vmatpush.bf16.msra.mxu0 %v1592
    %1605 = vmatmul.bf16.gmra.mxu0 %v1595
    %v1606 = vpop.f32.mrf.mxu0
    %v1607 = vadd.f32 0.0, %v1606
    %v1608 = vpop.f32.mrf.mxu0
    %v1609 = vadd.f32 0.0, %v1608
    %1610 = vdwg.mxu0
    %v1613 = vunpack.c.l.b16 %v1534
    %v1614 = vunpack.c.l.b16 %v1535
    %v1615 = vpack.c.b16 %v1614, %v1613
    %1616 = vrot.lane.b32.xlu0 %v717, 32
    %v1617 = vpop.permute.xlu0 %1616
    %v1620 = vsel %vm527, %v1615, 0
    %1622 = vmatpush.bf16.msra.mxu0 0
    %1623 = vmatpush.bf16.msra.mxu0 0
    %1624 = vmatpush.bf16.msra.mxu0 0
    %1625 = vmatpush.bf16.msra.mxu0 0
    %1626 = vmatpush.bf16.msra.mxu0 0
    %1627 = vmatpush.bf16.msra.mxu0 0
    %1628 = vmatpush.bf16.msra.mxu0 0
    %1629 = vmatpush.bf16.msra.mxu0 %v1617
    %1630 = vmatmul.bf16.gmra.mxu0 %v1620
    %v1631 = vpop.f32.mrf.mxu0
    %v1632 = vadd.f32 0.0, %v1631
    %v1633 = vpop.f32.mrf.mxu0
    %v1634 = vadd.f32 0.0, %v1633
    %1635 = vdwg.mxu0
    %1644 = vrot.lane.b32.xlu0 %v957, 32
    %v1645 = vpop.permute.xlu0 %1644
    %1646 = vrot.lane.b32.xlu0 %v959, 32
    %v1647 = vpop.permute.xlu0 %1646
    %1648 = vrot.lane.b32.xlu0 %v982, 32
    %v1649 = vpop.permute.xlu0 %1648
    %1650 = vrot.lane.b32.xlu0 %v984, 32
    %v1651 = vpop.permute.xlu0 %1650
    %1652 = vrot.lane.b32.xlu0 %v1007, 32
    %v1653 = vpop.permute.xlu0 %1652
    %1654 = vrot.lane.b32.xlu0 %v1009, 32
    %v1655 = vpop.permute.xlu0 %1654
    %1656 = vrot.lane.b32.xlu0 %v1032, 32
    %v1657 = vpop.permute.xlu0 %1656
    %1658 = vrot.lane.b32.xlu0 %v1034, 32
    %v1659 = vpop.permute.xlu0 %1658
    %1676 = vrot.lane.b32.xlu0 %v1257, 64
    %v1677 = vpop.permute.xlu0 %1676
    %1678 = vrot.lane.b32.xlu0 %v1259, 64
    %v1679 = vpop.permute.xlu0 %1678
    %1680 = vrot.lane.b32.xlu0 %v1282, 64
    %v1681 = vpop.permute.xlu0 %1680
    %1682 = vrot.lane.b32.xlu0 %v1284, 64
    %v1683 = vpop.permute.xlu0 %1682
    %1684 = vrot.lane.b32.xlu0 %v1307, 64
    %v1685 = vpop.permute.xlu0 %1684
    %1686 = vrot.lane.b32.xlu0 %v1309, 64
    %v1687 = vpop.permute.xlu0 %1686
    %1688 = vrot.lane.b32.xlu0 %v1332, 64
    %v1689 = vpop.permute.xlu0 %1688
    %1690 = vrot.lane.b32.xlu0 %v1334, 64
    %v1691 = vpop.permute.xlu0 %1690
    %1708 = vrot.lane.b32.xlu0 %v1557, 96
    %v1709 = vpop.permute.xlu0 %1708
    %1710 = vrot.lane.b32.xlu0 %v1559, 96
    %v1711 = vpop.permute.xlu0 %1710
    %1712 = vrot.lane.b32.xlu0 %v1582, 96
    %v1713 = vpop.permute.xlu0 %1712
    %1714 = vrot.lane.b32.xlu0 %v1584, 96
    %v1715 = vpop.permute.xlu0 %1714
    %1716 = vrot.lane.b32.xlu0 %v1607, 96
    %v1717 = vpop.permute.xlu0 %1716
    %1718 = vrot.lane.b32.xlu0 %v1609, 96
    %v1719 = vpop.permute.xlu0 %1718
    %1720 = vrot.lane.b32.xlu0 %v1632, 96
    %v1721 = vpop.permute.xlu0 %1720
    %1722 = vrot.lane.b32.xlu0 %v1634, 96
    %v1723 = vpop.permute.xlu0 %1722
    %v1732 = vsel %vm408, %v648, %v1645
    %v1733 = vsel %vm408, %v650, %v1647
    %v1734 = vsel %vm408, %v676, %v1649
    %v1735 = vsel %vm408, %v678, %v1651
    %v1736 = vsel %vm408, %v704, %v1653
    %v1737 = vsel %vm408, %v706, %v1655
    %v1738 = vsel %vm408, %v732, %v1657
    %v1739 = vsel %vm408, %v734, %v1659
    %vm1740 = vcmask 523264
    %v1741 = vsel %vm1740, %v1732, %v1677
    %v1742 = vsel %vm1740, %v1733, %v1679
    %v1743 = vsel %vm1740, %v1734, %v1681
    %v1744 = vsel %vm1740, %v1735, %v1683
    %v1745 = vsel %vm1740, %v1736, %v1685
    %v1746 = vsel %vm1740, %v1737, %v1687
    %v1747 = vsel %vm1740, %v1738, %v1689
    %v1748 = vsel %vm1740, %v1739, %v1691
    %vm1749 = vcmask 785408
    %v1750 = vsel %vm1749, %v1741, %v1709
    %v1751 = vsel %vm1749, %v1742, %v1711
    %v1752 = vsel %vm1749, %v1743, %v1713
    %v1753 = vsel %vm1749, %v1744, %v1715
    %v1754 = vsel %vm1749, %v1745, %v1717
    %v1755 = vsel %vm1749, %v1746, %v1719
    %v1756 = vsel %vm1749, %v1747, %v1721
    %v1757 = vsel %vm1749, %v1748, %v1723
    %v1758 = vpack.c.bf16 %v1751, %v1750
    %v1759 = vpack.c.bf16 %v1753, %v1752
    %v1760 = vpack.c.bf16 %v1755, %v1754
    %v1761 = vpack.c.bf16 %v1757, %v1756
    %v1762 = vld [vmem:[#allocation10] sm:$0xf]
    %v1763 = vld [vmem:[#allocation10 + $0x4] sm:$0xf]
    %v1764 = vld [vmem:[#allocation10 + $0x8] sm:$0xf]
    %v1765 = vld [vmem:[#allocation10 + $0xc] sm:$0xf]
    %v1766 = vld [vmem:[#allocation10 + $0x10] sm:$0xf]
    %v1767 = vld [vmem:[#allocation10 + $0x14] sm:$0xf]
    %v1768 = vld [vmem:[#allocation10 + $0x18] sm:$0xf]
    %v1769 = vld [vmem:[#allocation10 + $0x1c] sm:$0xf]
    %v1770 = vld [vmem:[#allocation10 + $0x20] sm:$0xf]
    %v1771 = vld [vmem:[#allocation10 + $0x24] sm:$0xf]
    %v1772 = vld [vmem:[#allocation10 + $0x28] sm:$0xf]
    %v1773 = vld [vmem:[#allocation10 + $0x2c] sm:$0xf]
    %v1774 = vld [vmem:[#allocation10 + $0x30] sm:$0xf]
    %v1775 = vld [vmem:[#allocation10 + $0x34] sm:$0xf]
    %v1776 = vld [vmem:[#allocation10 + $0x38] sm:$0xf]
    %v1777 = vld [vmem:[#allocation10 + $0x3c] sm:$0xf]
    %v1778 = vld [vmem:[%s5] sm:$0x1]
    %v1780 = vperm.slane %v1778, 0
    %v1798 = vunpack.c.l.b16 %v1762
    %v1799 = vunpack.c.l.b16 %v1763
    %v1800 = vunpack.c.l.b16 %v1764
    %v1801 = vunpack.c.l.b16 %v1765
    %v1802 = vunpack.c.l.b16 %v1766
    %v1803 = vunpack.c.l.b16 %v1767
    %v1804 = vunpack.c.l.b16 %v1768
    %v1805 = vunpack.c.l.b16 %v1769
    %v1806 = vunpack.c.l.b16 %v1770
    %v1807 = vunpack.c.l.b16 %v1771
    %v1808 = vunpack.c.l.b16 %v1772
    %v1809 = vunpack.c.l.b16 %v1773
    %v1810 = vunpack.c.l.b16 %v1774
    %v1811 = vunpack.c.l.b16 %v1775
    %v1812 = vunpack.c.l.b16 %v1776
    %v1813 = vunpack.c.l.b16 %v1777
    %v1814 = vpack.c.b16 %v1799, %v1798
    %v1815 = vpack.c.b16 %v1801, %v1800
    %v1816 = vpack.c.b16 %v1803, %v1802
    %v1817 = vpack.c.b16 %v1805, %v1804
    %v1818 = vpack.c.b16 %v1807, %v1806
    %v1819 = vpack.c.b16 %v1809, %v1808
    %v1820 = vpack.c.b16 %v1811, %v1810
    %v1821 = vpack.c.b16 %v1813, %v1812
    %1830 = vmatpush.bf16.msra.mxu0 %v1821
    %1831 = vmatpush.bf16.msra.mxu0 %v1820
    %1832 = vmatpush.bf16.msra.mxu0 %v1819
    %1833 = vmatpush.bf16.msra.mxu0 %v1818
    %1834 = vmatpush.bf16.msra.mxu0 %v1817
    %1835 = vmatpush.bf16.msra.mxu0 %v1816
    %1836 = vmatpush.bf16.msra.mxu0 %v1815
    %1837 = vmatpush.bf16.msra.mxu0 %v1814
    %1838 = vmatmul.bf16.gmra.mxu0 %v1758
    %v1839 = vpop.f32.mrf.mxu0
    %v1840 = vadd.f32 %v1780, %v1839
    %v1841 = vpop.f32.mrf.mxu0
    %v1842 = vadd.f32 %v1780, %v1841
    %1843 = vmatmul.bf16.gmra.mxu0 %v1759
    %v1844 = vpop.f32.mrf.mxu0
    %v1845 = vadd.f32 %v1780, %v1844
    %v1846 = vpop.f32.mrf.mxu0
    %v1847 = vadd.f32 %v1780, %v1846
    %1848 = vmatmul.bf16.gmra.mxu0 %v1760
    %v1849 = vpop.f32.mrf.mxu0
    %v1850 = vadd.f32 %v1780, %v1849
    %v1851 = vpop.f32.mrf.mxu0
    %v1852 = vadd.f32 %v1780, %v1851
    %1853 = vmatmul.bf16.gmra.mxu0 %v1761
    %v1854 = vpop.f32.mrf.mxu0
    %v1855 = vadd.f32 %v1780, %v1854
    %v1856 = vpop.f32.mrf.mxu0
    %v1857 = vadd.f32 %v1780, %v1856
    %1858 = vdwg.mxu0
    %1859 = vst [vmem:[#allocation11] sm:$0xff] %v1840
    %1860 = vst [vmem:[#allocation11 + $0x8] sm:$0xff] %v1842
    %1861 = vst [vmem:[#allocation11 + $0x10] sm:$0xff] %v1845
    %1862 = vst [vmem:[#allocation11 + $0x18] sm:$0xff] %v1847
    %1863 = vst [vmem:[#allocation11 + $0x20] sm:$0xff] %v1850
    %1864 = vst [vmem:[#allocation11 + $0x28] sm:$0xff] %v1852
    %1865 = vst [vmem:[#allocation11 + $0x30] sm:$0xff] %v1855
    %1866 = vst [vmem:[#allocation11 + $0x38] sm:$0xff] %v1857
    // Predicated region
    $region46: #{tpu_custom_call.1} parent=1 // pred_check
      _
    $region47: #{tpu_custom_call.1} parent=1 // pred_check_branch
      %1868 = sbr.rel (0) target = $region49
    $region48: #{tpu_custom_call.1} parent=1 // pred_region
      %1870 = vsyncadd [#allocation4], 0
      %s1871 = sshll.u32 [#allocation11], 4
      %s1872 = int_to_ptr.vmem [resolvable:$true] %s1871
      %s1873 = sshll.u32 %s6, 4
      %s1874 = int_to_ptr.hbm [resolvable:$true] %s1873
      %1879 = dma.vmem_to_hbm [thread:$0]  %s1872, 1024, %s1874, [#allocation4], 128, 128, 8
    $region49: #{tpu_custom_call.1} parent=1 // pred_fallthru
      _
    // Predicated region
    $region50: #{tpu_custom_call.1} parent=1 // pred_check
      _
    $region51: #{tpu_custom_call.1} parent=1 // pred_check_branch
      %1881 = sbr.rel (0) target = $region53
    $region52: #{tpu_custom_call.1} parent=1 // pred_region
      %1883 = dma.done [#allocation4], 1024
    $region53: #{tpu_custom_call.1} parent=1 // pred_fallthru
      _
    %1884 = vsyncpa [#allocation3], 1
    %1885 = vsyncpa [#allocation6], 1
    %1886 = vsyncpa [#allocation9], 1
    %1887 = vsyncpa [#allocation4], 1

</llo_original>
